<compile_context>
chip_gen: v6e
topology: v6e:2x2x1
jax: 0.10.0
libtpu: 0.0.40
codegen_flags: <defaults>
</compile_context>

<pallas_src>
import jax
import jax.numpy as jnp
from jax.experimental import pallas as pl
from jax.experimental.pallas import tpu as pltpu

# ----------------------------- problem sizes --------------------------------
B = 2                 # generated batch
NZ = 32               # latent dim
NC = 8                # number of classes
C, H, W = 4, 16, 16   # image shape (NCHW)
IMG = C * H * W       # 1024 flattened image
GH = 128              # generator hidden width
DH = 128              # discriminator hidden width (== D_middle feature width)
LANE = 128            # lane-dense width used for the D_out output slab


def _act_dtype():
    """Elementwise dtype for the G activation chain.

    v6e/v7x have bf16-native VPU/EUP -> run relu/tanh/adds in bf16 (halves vreg
    pressure, removes per-matmul casts).  v5e (and anything unknown) keeps f32.
    """
    try:
        kind = jax.devices()[0].device_kind.lower()
    except Exception:
        return jnp.float32
    return jnp.bfloat16 if ("v6" in kind or "v7" in kind) else jnp.float32


# ------------------------------ fused kernel ---------------------------------
def _make_gd_kernel(n_gen, has_x, want_gz, act_dtype):
    """Build the fused G(z,gy) -> concat(G_z, x) -> D(...) kernel.

    Row layout of the padded batch (n_pad rows, multiple of 16):
      rows [0, n_gen)          : generated samples (G_z)
      rows [n_gen, n_gen+n_x)  : real samples (provided via x_ref)
      remaining rows           : zero padding (sliced off in the wrapper)
    """

    def kernel(*refs):
        it = iter(refs)
        z_ref, ge_ref, de_ref = next(it), next(it), next(it)   # activations + gathered embeddings
        x_ref = next(it) if has_x else None
        wg1_ref, bg1_ref, wg2_ref, bg2_ref = next(it), next(it), next(it), next(it)
        wd1_ref, bd1_ref, wd2_ref, bd2_ref = next(it), next(it), next(it), next(it)
        dout_ref, dmid_ref = next(it), next(it)
        gz_ref = next(it) if want_gz else None

        # ------------------------------ generator ------------------------------
        zin = z_ref[...] + ge_ref[...]                                   # f32 (n_pad, NZ)
        h = jnp.dot(zin.astype(jnp.bfloat16), wg1_ref[...],
                    preferred_element_type=jnp.float32) + bg1_ref[...]
        h = jnp.maximum(h, 0.0).astype(act_dtype)
        img = jnp.dot(h.astype(jnp.bfloat16), wg2_ref[...],
                      preferred_element_type=jnp.float32) + bg2_ref[...]
        gz = jnp.tanh(img.astype(act_dtype))                             # (n_pad, IMG)
        if want_gz:
            gz_ref[...] = gz.astype(jnp.float32)

        # ------------------- in-VMEM concat of [G_z ; x_real] ------------------
        if has_x:
            row = jax.lax.broadcasted_iota(jnp.int32, (gz.shape[0], 1), 0)
            d_in = jnp.where(row < n_gen, gz, x_ref[...].astype(act_dtype))
        else:
            d_in = gz

        # ----------------------------- discriminator ---------------------------
        hd = jnp.dot(d_in.astype(jnp.bfloat16), wd1_ref[...],
                     preferred_element_type=jnp.float32) + bd1_ref[...]
        hd = jnp.maximum(hd, 0.0)                                        # f32 D_middle feature
        dmid_ref[...] = hd

        # Linear head + class-projection folded into ONE VPU multiply + lane
        # reduce (kept in f32):  D_out = sum(h * (wd2_row + e_y), -1) + bd2
        w = wd2_ref[...] + de_ref[...]                                   # f32 (n_pad, DH)
        dcol = jnp.sum(hd * w, axis=-1, keepdims=True) + bd2_ref[...]    # (n_pad, 1)
        # Lane-dense output slab; column 0 is the real D_out (sliced in wrapper).
        dout_ref[...] = jnp.broadcast_to(dcol, dout_ref.shape)

    return kernel


def _full(shape):
    nd = len(shape)
    return pl.BlockSpec(shape, lambda *_: (0,) * nd)   # whole-array block


def gd_fused_pallas(z_pad, ge_rows, de_rows, x_part, params, n_gen,
                    has_x, want_gz):
    n_pad = z_pad.shape[0]
    kernel = _make_gd_kernel(n_gen, has_x, want_gz, _act_dtype())

    inputs = [z_pad, ge_rows, de_rows]
    if has_x:
        inputs.append(x_part)
    inputs += [params["wg1"], params["bg1"], params["wg2"], params["bg2"],
               params["wd1"], params["bd1"], params["wd2"], params["bd2"]]

    out_shapes = [jax.ShapeDtypeStruct((n_pad, LANE), jnp.float32),   # D_out slab
                  jax.ShapeDtypeStruct((n_pad, DH), jnp.float32)]     # D_middle
    if want_gz:
        out_shapes.append(jax.ShapeDtypeStruct((n_pad, IMG), jnp.float32))  # G_z flat

    return pl.pallas_call(
        kernel,
        grid=(1,),
        in_specs=[_full(a.shape) for a in inputs],
        out_specs=tuple(_full(s.shape) for s in out_shapes),
        out_shape=tuple(out_shapes),
        compiler_params=pltpu.CompilerParams(
            dimension_semantics=("arbitrary",)),
    )(*inputs)


# ------------------------- G_D.forward equivalent ----------------------------
def g_d_forward(z, gy, params, x=None, dy=None, train_G=False,
                return_G_z=False, split_D=False, mixup=False,
                mixup_only=False, target_map=None):
    """Mirrors G_D.forward (the wrapper around G and D) with a fused kernel."""
    # TODO(synk): the mixup / mixup_only / split_D branches and the G.fp16/D.fp16
    # cast flags of the original wrapper are not implemented in the fused kernel.
    if mixup or mixup_only:
        raise NotImplementedError("mixup paths are not implemented in the fused kernel")

    has_x = x is not None
    want_gz = has_x or return_G_z
    n_gen = z.shape[0]
    n_real = x.shape[0] if has_x else 0
    n_rows = n_gen + n_real
    # Pad the batch/sublane dim to a multiple of 16: bf16 MXU operands pack
    # [16,128] per vreg, so 16 rows = full packed LHS vregs.
    n_pad = max(16, ((n_rows + 15) // 16) * 16)

    z_pad = jnp.pad(z.astype(jnp.float32), ((0, n_pad - n_gen), (0, 0)))
    # Tiny wrapper-side embedding row gathers (replaces the serialized in-kernel
    # per-row SMEM->VMEM gather on the kernel's critical-path head).
    ge_rows = jnp.pad(params["wge"][gy.astype(jnp.int32)],
                      ((0, n_pad - n_gen), (0, 0)))
    if has_x:
        cls = jnp.concatenate([gy.astype(jnp.int32), dy.astype(jnp.int32)])
    else:
        cls = gy.astype(jnp.int32)
    de_rows = jnp.pad(params["wde"][cls], ((0, n_pad - n_rows), (0, 0)))
    x_part = (jnp.pad(x.reshape(n_real, IMG).astype(jnp.float32),
                      ((n_gen, n_pad - n_rows), (0, 0)))
              if has_x else None)

    outs = gd_fused_pallas(z_pad, ge_rows, de_rows, x_part, params, n_gen,
                           has_x, want_gz)
    dout_pad, dmid_pad = outs[0], outs[1]
    gz_pad = outs[2] if want_gz else None

    D_out = dout_pad[:n_rows, :1]            # column 0 of the lane-dense slab
    D_middle = dmid_pad[:n_rows]
    G_z = gz_pad[:n_gen].reshape(n_gen, C, H, W) if want_gz else None   # NCHW

    if has_x:
        # (D_fake, D_real, G_z, D_middle_fake, D_middle_real)
        return (D_out[:n_gen], D_out[n_gen:n_rows], G_z,
                D_middle[:n_gen], D_middle[n_gen:n_rows])
    out = (D_out,)
    if return_G_z:
        out = out + (G_z,)
    out = out + (D_middle,)
    return out


# --------------------------------- params ------------------------------------
def make_params(key):
    ks = jax.random.split(key, 7)
    s = lambda fan_in: 1.0 / jnp.sqrt(jnp.float32(fan_in))
    return {
        # generator (big weights stored/streamed as bf16; embeddings & biases f32)
        "wge": jax.random.normal(ks[0], (NC, NZ), jnp.float32) * s(NC),
        "wg1": (jax.random.normal(ks[1], (NZ, GH), jnp.float32) * s(NZ)
                ).astype(jnp.bfloat16),
        "bg1": jnp.zeros((1, GH), jnp.float32),
        "wg2": (jax.random.normal(ks[2], (GH, IMG), jnp.float32) * s(GH)
                ).astype(jnp.bfloat16),
        "bg2": jnp.zeros((1, IMG), jnp.float32),
        # discriminator
        "wd1": (jax.random.normal(ks[3], (IMG, DH), jnp.float32) * s(IMG)
                ).astype(jnp.bfloat16),
        "bd1": jnp.zeros((1, DH), jnp.float32),
        "wde": jax.random.normal(ks[4], (NC, DH), jnp.float32) * s(NC),
        "wd2": jax.random.normal(ks[5], (1, DH), jnp.float32) * s(DH),   # row form
        "bd2": jnp.zeros((1, 1), jnp.float32),
    }


if __name__ == "__main__":
    root = jax.random.PRNGKey(0)
    kp, kz, ky, kx, kdy = jax.random.split(root, 5)
    params = make_params(kp)

    z = jax.random.normal(kz, (B, NZ), jnp.float32)
    gy = jax.random.randint(ky, (B,), 0, NC)
    x = jax.random.normal(kx, (B, C, H, W), jnp.float32)      # NCHW real images
    dy = jax.random.randint(kdy, (B,), 0, NC)

    # Path 1: fake-only (x=None) -> (D_out, D_middle)
    d_out, d_mid = g_d_forward(z, gy, params)
    jax.block_until_ready((d_out, d_mid))
    assert d_out.shape == (B, 1) and d_mid.shape == (B, DH)

    # Path 2: fake-only with return_G_z -> (D_out, G_z, D_middle)
    d_out2, g_z2, d_mid2 = g_d_forward(z, gy, params, return_G_z=True)
    jax.block_until_ready((d_out2, g_z2, d_mid2))
    assert g_z2.shape == (B, C, H, W)

    # Path 3: with real samples -> (D_fake, D_real, G_z, Dmid_fake, Dmid_real)
    out = g_d_forward(z, gy, params, x=x, dy=dy)
    jax.block_until_ready(out)
    assert out[0].shape == (B, 1) and out[1].shape == (B, 1)
    assert out[2].shape == (B, C, H, W)
    assert out[3].shape == (B, DH) and out[4].shape == (B, DH)

    print("KERNEL_OK")
</pallas_src>

<mosaic_0001>
module attributes {stable_mosaic.version = 11 : i64} {
  func.func @kernel(%arg0: i32, %arg1: memref<16x32xf32, #tpu.memory_space<vmem>>, %arg2: memref<16x32xf32, #tpu.memory_space<vmem>>, %arg3: memref<16x128xf32, #tpu.memory_space<vmem>>, %arg4: memref<32x128xbf16, #tpu.memory_space<vmem>>, %arg5: memref<1x128xf32, #tpu.memory_space<vmem>>, %arg6: memref<128x1024xbf16, #tpu.memory_space<vmem>>, %arg7: memref<1x1024xf32, #tpu.memory_space<vmem>>, %arg8: memref<1024x128xbf16, #tpu.memory_space<vmem>>, %arg9: memref<1x128xf32, #tpu.memory_space<vmem>>, %arg10: memref<1x128xf32, #tpu.memory_space<vmem>>, %arg11: memref<1x1xf32, #tpu.memory_space<vmem>>, %arg12: memref<16x128xf32, #tpu.memory_space<vmem>>, %arg13: memref<16x128xf32, #tpu.memory_space<vmem>>) attributes {dimension_semantics = [#tpu.dimension_semantics<arbitrary>], iteration_bounds = array<i64: 1>, scalar_prefetch = 0 : i64, scratch_operands = 0 : i64, tpu.core_type = #tpu.core_type<tc>, window_params = [{pipeline_mode = #tpu.pipeline_mode<synchronous>, transform_indices = @transform_0, window_bounds = array<i64: 16, 32>}, {pipeline_mode = #tpu.pipeline_mode<synchronous>, transform_indices = @transform_1, window_bounds = array<i64: 16, 32>}, {pipeline_mode = #tpu.pipeline_mode<synchronous>, transform_indices = @transform_2, window_bounds = array<i64: 16, 128>}, {pipeline_mode = #tpu.pipeline_mode<synchronous>, transform_indices = @transform_3, window_bounds = array<i64: 32, 128>}, {pipeline_mode = #tpu.pipeline_mode<synchronous>, transform_indices = @transform_4, window_bounds = array<i64: 1, 128>}, {pipeline_mode = #tpu.pipeline_mode<synchronous>, transform_indices = @transform_5, window_bounds = array<i64: 128, 1024>}, {pipeline_mode = #tpu.pipeline_mode<synchronous>, transform_indices = @transform_6, window_bounds = array<i64: 1, 1024>}, {pipeline_mode = #tpu.pipeline_mode<synchronous>, transform_indices = @transform_7, window_bounds = array<i64: 1024, 128>}, {pipeline_mode = #tpu.pipeline_mode<synchronous>, transform_indices = @transform_8, window_bounds = array<i64: 1, 128>}, {pipeline_mode = #tpu.pipeline_mode<synchronous>, transform_indices = @transform_9, window_bounds = array<i64: 1, 128>}, {pipeline_mode = #tpu.pipeline_mode<synchronous>, transform_indices = @transform_10, window_bounds = array<i64: 1, 1>}, {pipeline_mode = #tpu.pipeline_mode<synchronous>, transform_indices = @transform_11, window_bounds = array<i64: 16, 128>}, {pipeline_mode = #tpu.pipeline_mode<synchronous>, transform_indices = @transform_12, window_bounds = array<i64: 16, 128>}]} {
    %c0 = arith.constant 0 : index
    %c0_0 = arith.constant 0 : index
    %0 = vector.load %arg1[%c0, %c0_0] : memref<16x32xf32, #tpu.memory_space<vmem>>, vector<16x32xf32>
    %c0_1 = arith.constant 0 : index
    %c0_2 = arith.constant 0 : index
    %1 = vector.load %arg2[%c0_1, %c0_2] : memref<16x32xf32, #tpu.memory_space<vmem>>, vector<16x32xf32>
    %2 = arith.addf %0, %1 : vector<16x32xf32>
    %3 = arith.truncf %2 : vector<16x32xf32> to vector<16x32xbf16>
    %c0_3 = arith.constant 0 : index
    %c0_4 = arith.constant 0 : index
    %4 = vector.load %arg4[%c0_3, %c0_4] : memref<32x128xbf16, #tpu.memory_space<vmem>>, vector<32x128xbf16>
    %cst = arith.constant dense<0.000000e+00> : vector<16x128xf32>
    %5 = tpu.matmul %3, %4, %cst {dimension_numbers = #tpu.dot_dimension_numbers<[1], [0], [0], [1], [0, 0, 1, 1], [], []>} : vector<16x32xbf16>, vector<32x128xbf16>, vector<16x128xf32> -> vector<16x128xf32>
    %c0_5 = arith.constant 0 : index
    %c0_6 = arith.constant 0 : index
    %6 = vector.load %arg5[%c0_5, %c0_6] : memref<1x128xf32, #tpu.memory_space<vmem>>, vector<1x128xf32>
    %7 = vector.broadcast %6 : vector<1x128xf32> to vector<16x128xf32>
    %8 = arith.addf %5, %7 : vector<16x128xf32>
    %cst_7 = arith.constant 0.000000e+00 : f32
    %9 = vector.broadcast %cst_7 : f32 to vector<16x128xf32>
    %10 = arith.maximumf %8, %9 : vector<16x128xf32>
    %11 = arith.truncf %10 : vector<16x128xf32> to vector<16x128xbf16>
    %c0_8 = arith.constant 0 : index
    %c0_9 = arith.constant 0 : index
    %12 = vector.load %arg6[%c0_8, %c0_9] : memref<128x1024xbf16, #tpu.memory_space<vmem>>, vector<128x1024xbf16>
    %cst_10 = arith.constant dense<0.000000e+00> : vector<16x1024xf32>
    %13 = tpu.matmul %11, %12, %cst_10 {dimension_numbers = #tpu.dot_dimension_numbers<[1], [0], [0], [1], [0, 0, 1, 1], [], []>} : vector<16x128xbf16>, vector<128x1024xbf16>, vector<16x1024xf32> -> vector<16x1024xf32>
    %c0_11 = arith.constant 0 : index
    %c0_12 = arith.constant 0 : index
    %14 = vector.load %arg7[%c0_11, %c0_12] : memref<1x1024xf32, #tpu.memory_space<vmem>>, vector<1x1024xf32>
    %15 = vector.broadcast %14 : vector<1x1024xf32> to vector<16x1024xf32>
    %16 = arith.addf %13, %15 : vector<16x1024xf32>
    %17 = math.tanh %16 : vector<16x1024xf32>
    %18 = arith.truncf %17 : vector<16x1024xf32> to vector<16x1024xbf16>
    %c0_13 = arith.constant 0 : index
    %c0_14 = arith.constant 0 : index
    %19 = vector.load %arg8[%c0_13, %c0_14] : memref<1024x128xbf16, #tpu.memory_space<vmem>>, vector<1024x128xbf16>
    %cst_15 = arith.constant dense<0.000000e+00> : vector<16x128xf32>
    %20 = tpu.matmul %18, %19, %cst_15 {dimension_numbers = #tpu.dot_dimension_numbers<[1], [0], [0], [1], [0, 0, 1, 1], [], []>} : vector<16x1024xbf16>, vector<1024x128xbf16>, vector<16x128xf32> -> vector<16x128xf32>
    %c0_16 = arith.constant 0 : index
    %c0_17 = arith.constant 0 : index
    %21 = vector.load %arg9[%c0_16, %c0_17] : memref<1x128xf32, #tpu.memory_space<vmem>>, vector<1x128xf32>
    %22 = vector.broadcast %21 : vector<1x128xf32> to vector<16x128xf32>
    %23 = arith.addf %20, %22 : vector<16x128xf32>
    %cst_18 = arith.constant 0.000000e+00 : f32
    %24 = vector.broadcast %cst_18 : f32 to vector<16x128xf32>
    %25 = arith.maximumf %23, %24 : vector<16x128xf32>
    %c0_19 = arith.constant 0 : index
    %c0_20 = arith.constant 0 : index
    %26 = vector.load %arg13[%c0_19, %c0_20] : memref<16x128xf32, #tpu.memory_space<vmem>>, vector<16x128xf32>
    tpu.vector_store %arg13[%c0_19, %c0_20], %25 {strides = array<i32>} : memref<16x128xf32, #tpu.memory_space<vmem>>, vector<16x128xf32>,
    %c0_21 = arith.constant 0 : index
    %c0_22 = arith.constant 0 : index
    %27 = vector.load %arg10[%c0_21, %c0_22] : memref<1x128xf32, #tpu.memory_space<vmem>>, vector<1x128xf32>
    %c0_23 = arith.constant 0 : index
    %c0_24 = arith.constant 0 : index
    %28 = vector.load %arg3[%c0_23, %c0_24] : memref<16x128xf32, #tpu.memory_space<vmem>>, vector<16x128xf32>
    %29 = vector.broadcast %27 : vector<1x128xf32> to vector<16x128xf32>
    %30 = arith.addf %29, %28 : vector<16x128xf32>
    %31 = arith.mulf %25, %30 : vector<16x128xf32>
    %cst_25 = arith.constant dense<0.000000e+00> : vector<16xf32>
    %32 = vector.multi_reduction <add>, %31, %cst_25 [1] : vector<16x128xf32> to vector<16xf32>
    %33 = vector.shape_cast %32 : vector<16xf32> to vector<16x1xf32>
    %c0_26 = arith.constant 0 : index
    %c0_27 = arith.constant 0 : index
    %34 = vector.load %arg11[%c0_26, %c0_27] : memref<1x1xf32, #tpu.memory_space<vmem>>, vector<1x1xf32>
    %35 = vector.broadcast %34 : vector<1x1xf32> to vector<16x1xf32>
    %36 = arith.addf %33, %35 : vector<16x1xf32>
    %37 = vector.shape_cast %36 : vector<16x1xf32> to vector<16x1xf32>
    %38 = vector.broadcast %37 : vector<16x1xf32> to vector<16x128xf32>
    %c0_28 = arith.constant 0 : index
    %c0_29 = arith.constant 0 : index
    %39 = vector.load %arg12[%c0_28, %c0_29] : memref<16x128xf32, #tpu.memory_space<vmem>>, vector<16x128xf32>
    tpu.vector_store %arg12[%c0_28, %c0_29], %38 {strides = array<i32>} : memref<16x128xf32, #tpu.memory_space<vmem>>, vector<16x128xf32>,
    return
  }
  func.func @transform_0(%arg0: i32) -> (i32, i32) {
    %c0_i32 = arith.constant 0 : i32
    %c0_i32_0 = arith.constant 0 : i32
    %c0_i32_1 = arith.constant 0 : i32
    return %c0_i32, %c0_i32_0 : i32, i32
  }
  func.func @transform_1(%arg0: i32) -> (i32, i32) {
    %c0_i32 = arith.constant 0 : i32
    %c0_i32_0 = arith.constant 0 : i32
    %c0_i32_1 = arith.constant 0 : i32
    return %c0_i32, %c0_i32_0 : i32, i32
  }
  func.func @transform_2(%arg0: i32) -> (i32, i32) {
    %c0_i32 = arith.constant 0 : i32
    %c0_i32_0 = arith.constant 0 : i32
    %c0_i32_1 = arith.constant 0 : i32
    return %c0_i32, %c0_i32_0 : i32, i32
  }
  func.func @transform_3(%arg0: i32) -> (i32, i32) {
    %c0_i32 = arith.constant 0 : i32
    %c0_i32_0 = arith.constant 0 : i32
    %c0_i32_1 = arith.constant 0 : i32
    return %c0_i32, %c0_i32_0 : i32, i32
  }
  func.func @transform_4(%arg0: i32) -> (i32, i32) {
    %c0_i32 = arith.constant 0 : i32
    %c0_i32_0 = arith.constant 0 : i32
    %c0_i32_1 = arith.constant 0 : i32
    return %c0_i32, %c0_i32_0 : i32, i32
  }
  func.func @transform_5(%arg0: i32) -> (i32, i32) {
    %c0_i32 = arith.constant 0 : i32
    %c0_i32_0 = arith.constant 0 : i32
    %c0_i32_1 = arith.constant 0 : i32
    return %c0_i32, %c0_i32_0 : i32, i32
  }
  func.func @transform_6(%arg0: i32) -> (i32, i32) {
    %c0_i32 = arith.constant 0 : i32
    %c0_i32_0 = arith.constant 0 : i32
    %c0_i32_1 = arith.constant 0 : i32
    return %c0_i32, %c0_i32_0 : i32, i32
  }
  func.func @transform_7(%arg0: i32) -> (i32, i32) {
    %c0_i32 = arith.constant 0 : i32
    %c0_i32_0 = arith.constant 0 : i32
    %c0_i32_1 = arith.constant 0 : i32
    return %c0_i32, %c0_i32_0 : i32, i32
  }
  func.func @transform_8(%arg0: i32) -> (i32, i32) {
    %c0_i32 = arith.constant 0 : i32
    %c0_i32_0 = arith.constant 0 : i32
    %c0_i32_1 = arith.constant 0 : i32
    return %c0_i32, %c0_i32_0 : i32, i32
  }
  func.func @transform_9(%arg0: i32) -> (i32, i32) {
    %c0_i32 = arith.constant 0 : i32
    %c0_i32_0 = arith.constant 0 : i32
    %c0_i32_1 = arith.constant 0 : i32
    return %c0_i32, %c0_i32_0 : i32, i32
  }
  func.func @transform_10(%arg0: i32) -> (i32, i32) {
    %c0_i32 = arith.constant 0 : i32
    %c0_i32_0 = arith.constant 0 : i32
    %c0_i32_1 = arith.constant 0 : i32
    return %c0_i32, %c0_i32_0 : i32, i32
  }
  func.func @transform_11(%arg0: i32) -> (i32, i32) {
    %c0_i32 = arith.constant 0 : i32
    %c0_i32_0 = arith.constant 0 : i32
    %c0_i32_1 = arith.constant 0 : i32
    return %c0_i32, %c0_i32_0 : i32, i32
  }
  func.func @transform_12(%arg0: i32) -> (i32, i32) {
    %c0_i32 = arith.constant 0 : i32
    %c0_i32_0 = arith.constant 0 : i32
    %c0_i32_1 = arith.constant 0 : i32
    return %c0_i32, %c0_i32_0 : i32, i32
  }
}

</mosaic_0001>

<llo_original>
// kernel: tpu_custom_call.1
$region0: #{tpu_custom_call.1}
  #allocation0 [shape = 'u32[]', space=smem, size = 0x4, offset = 0x4, fixed_abs, tag = 'smem constant byte address 0x4 - core index']
  #allocation1 [shape = 'u32[144,128]{1,0:T(1,128)}', space=vmem, size = 0x12000, scoped, tag = 'internal scratch']
  #allocation2 [shape = 'f32[1,1]{1,0:T(1,128)S(1)}', space=vmem, size = 0x200, scoped, tag = 'scoped memory for tpu_custom_call.1']
  %s0 = inlined_call_operand.hbm [shape: f32[16,32], index: 0, kind: input, shape index: {}]
  %s1 = inlined_call_operand.hbm [shape: f32[16,32], index: 1, kind: input, shape index: {}]
  %s2 = inlined_call_operand.hbm [shape: f32[16,128], index: 2, kind: input, shape index: {}]
  %s3 = inlined_call_operand.hbm [shape: bf16[32,128], index: 3, kind: input, shape index: {}]
  %s4 = inlined_call_operand.vmem [shape: f32[1,128], index: 4, kind: input, shape index: {}]
  %s5 = inlined_call_operand.hbm [shape: bf16[128,1024], index: 5, kind: input, shape index: {}]
  %s6 = inlined_call_operand.vmem [shape: f32[1,1024], index: 6, kind: input, shape index: {}]
  %s7 = inlined_call_operand.hbm [shape: bf16[1024,128], index: 7, kind: input, shape index: {}]
  %s8 = inlined_call_operand.vmem [shape: f32[1,128], index: 8, kind: input, shape index: {}]
  %s9 = inlined_call_operand.vmem [shape: f32[1,128], index: 9, kind: input, shape index: {}]
  %s10 = inlined_call_operand.<no memory space> [shape: f32[1,1], index: 10, kind: input, shape index: {}]
  %s11 = inlined_call_operand.hbm [shape: f32[16,128], index: 11, kind: output, shape index: {0}]
  %s12 = inlined_call_operand.hbm [shape: f32[16,128], index: 12, kind: output, shape index: {1}]
  %13 = xla_tuple %s11, %s12
  %s14 = sld [smem:[#allocation0]]
  $region86: #{tpu_custom_call.1} parent=0
    _
  %s16 = ssub.s32 1, %s14
  %s17 = scalar_select 0, %s16, %s14
  %v18 = vstv %s10
  %19 = vst [vmem:[#allocation2] sm:$0x1] %v18
  $region1: #{tpu_custom_call.1} parent=0
    #allocation3 [shape = 'u8[8192]{0}', space=vmem, size = 0x2000, scoped, tag = 'input window, operand 0, single buffered']
    #allocation4 [shape = 's32[1]{0}', space=sflag, size = 0x4, scoped, tag = 'scoped memory for tpu_custom_call.1']
    #allocation5 [shape = 's32[1]{0}', space=sflag, size = 0x4, scoped, tag = 'scoped memory for tpu_custom_call.1']
    #allocation6 [shape = 'u8[8192]{0}', space=vmem, size = 0x2000, scoped, tag = 'input window, operand 1, single buffered']
    #allocation7 [shape = 's32[1]{0}', space=sflag, size = 0x4, scoped, tag = 'scoped memory for tpu_custom_call.1']
    #allocation8 [shape = 'u8[8192]{0}', space=vmem, size = 0x2000, scoped, tag = 'input window, operand 2, single buffered']
    #allocation9 [shape = 'u8[8192]{0}', space=vmem, size = 0x2000, scoped, tag = 'input window, operand 3, single buffered']
    #allocation10 [shape = 's32[1]{0}', space=sflag, size = 0x4, scoped, tag = 'scoped memory for tpu_custom_call.1']
    #allocation11 [shape = 'u8[262144]{0}', space=vmem, size = 0x40000, scoped, tag = 'input window, operand 5, single buffered']
    #allocation12 [shape = 'u8[262144]{0}', space=vmem, size = 0x40000, scoped, tag = 'input window, operand 7, single buffered']
    #allocation13 [shape = 's32[1]{0}', space=sflag, size = 0x4, scoped, tag = 'scoped memory for tpu_custom_call.1']
    #allocation14 [shape = 'u8[8192]{0}', space=vmem, size = 0x2000, scoped, tag = 'output window, operand 0, single buffered']
    #allocation15 [shape = 'u8[8192]{0}', space=vmem, size = 0x2000, scoped, tag = 'output window, operand 1, single buffered']
    #allocation16 [shape = 's32[1]{0}', space=sflag, size = 0x4, scoped, tag = 'scoped memory for tpu_custom_call.1']
    %20 = vsyncpa [#allocation4], 0
    %21 = vsyncpa [#allocation7], 0
    %22 = vsyncpa [#allocation10], 0
    %23 = vsyncpa [#allocation13], 0
    %24 = vsyncpa [#allocation5], 0
    %25 = vsyncpa [#allocation16], 0
    // Predicated region
    $region2: #{tpu_custom_call.1} parent=1 // pred_check
      _
    $region3: #{tpu_custom_call.1} parent=1 // pred_check_branch
      %27 = sbr.rel (0) target = $region5
    $region4: #{tpu_custom_call.1} parent=1 // pred_region
      %s29 = ssub.s32 256, 256
      %30 = vsyncadd [#allocation4], %s29
      %s31 = sshll.u32 [#allocation3], 4
      %s32 = int_to_ptr.vmem [resolvable:$true] %s31
      %37 = dma.hbm_to_vmem [thread:$0]  %s0, 256, %s32, [#allocation4], 128, 128, 8
    $region5: #{tpu_custom_call.1} parent=1 // pred_fallthru
      _
    // Predicated region
    $region6: #{tpu_custom_call.1} parent=1 // pred_check
      _
    $region7: #{tpu_custom_call.1} parent=1 // pred_check_branch
      %39 = sbr.rel (0) target = $region9
    $region8: #{tpu_custom_call.1} parent=1 // pred_region
      %s41 = ssub.s32 256, 256
      %42 = vsyncadd [#allocation7], %s41
      %s43 = sshll.u32 [#allocation6], 4
      %s44 = int_to_ptr.vmem [resolvable:$true] %s43
      %49 = dma.hbm_to_vmem [thread:$0]  %s1, 256, %s44, [#allocation7], 128, 128, 8
    $region9: #{tpu_custom_call.1} parent=1 // pred_fallthru
      _
    // Predicated region
    $region10: #{tpu_custom_call.1} parent=1 // pred_check
      _
    $region11: #{tpu_custom_call.1} parent=1 // pred_check_branch
      %51 = sbr.rel (0) target = $region13
    $region12: #{tpu_custom_call.1} parent=1 // pred_region
      %s53 = ssub.s32 256, 256
      %54 = vsyncadd [#allocation7], %s53
      %s55 = sshll.u32 [#allocation8], 4
      %s56 = int_to_ptr.vmem [resolvable:$true] %s55
      %61 = dma.hbm_to_vmem [thread:$0]  %s2, 256, %s56, [#allocation7], 128, 128, 8
    $region13: #{tpu_custom_call.1} parent=1 // pred_fallthru
      _
    // Predicated region
    $region14: #{tpu_custom_call.1} parent=1 // pred_check
      _
    $region15: #{tpu_custom_call.1} parent=1 // pred_check_branch
      %63 = sbr.rel (0) target = $region17
    $region16: #{tpu_custom_call.1} parent=1 // pred_region
      %s65 = ssub.s32 256, 256
      %66 = vsyncadd [#allocation10], %s65
      %s67 = sshll.u32 [#allocation9], 4
      %s68 = int_to_ptr.vmem [resolvable:$true] %s67
      %73 = dma.hbm_to_vmem [thread:$0]  %s3, 256, %s68, [#allocation10], 64, 64, 4
    $region17: #{tpu_custom_call.1} parent=1 // pred_fallthru
      _
    // Predicated region
    $region18: #{tpu_custom_call.1} parent=1 // pred_check
      _
    $region19: #{tpu_custom_call.1} parent=1 // pred_check_branch
      %75 = sbr.rel (0) target = $region21
    $region20: #{tpu_custom_call.1} parent=1 // pred_region
      _
    $region21: #{tpu_custom_call.1} parent=1 // pred_fallthru
      _
    // Predicated region
    $region22: #{tpu_custom_call.1} parent=1 // pred_check
      _
    $region23: #{tpu_custom_call.1} parent=1 // pred_check_branch
      %77 = sbr.rel (0) target = $region25
    $region24: #{tpu_custom_call.1} parent=1 // pred_region
      %s79 = ssub.s32 8192, 8192
      %80 = vsyncadd [#allocation10], %s79
      %s81 = sshll.u32 [#allocation11], 4
      %s82 = int_to_ptr.vmem [resolvable:$true] %s81
      %87 = dma.hbm_to_vmem [thread:$0]  %s5, 8192, %s82, [#allocation10], 512, 512, 32
    $region25: #{tpu_custom_call.1} parent=1 // pred_fallthru
      _
    // Predicated region
    $region26: #{tpu_custom_call.1} parent=1 // pred_check
      _
    $region27: #{tpu_custom_call.1} parent=1 // pred_check_branch
      %89 = sbr.rel (0) target = $region29
    $region28: #{tpu_custom_call.1} parent=1 // pred_region
      _
    $region29: #{tpu_custom_call.1} parent=1 // pred_fallthru
      _
    // Predicated region
    $region30: #{tpu_custom_call.1} parent=1 // pred_check
      _
    $region31: #{tpu_custom_call.1} parent=1 // pred_check_branch
      %91 = sbr.rel (0) target = $region33
    $region32: #{tpu_custom_call.1} parent=1 // pred_region
      %s93 = ssub.s32 8192, 8192
      %94 = vsyncadd [#allocation13], %s93
      %s95 = sshll.u32 [#allocation12], 4
      %s96 = int_to_ptr.vmem [resolvable:$true] %s95
      %101 = dma.hbm_to_vmem [thread:$0]  %s7, 8192, %s96, [#allocation13], 64, 64, 4
    $region33: #{tpu_custom_call.1} parent=1 // pred_fallthru
      _
    // Predicated region
    $region34: #{tpu_custom_call.1} parent=1 // pred_check
      _
    $region35: #{tpu_custom_call.1} parent=1 // pred_check_branch
      %103 = sbr.rel (0) target = $region37
    $region36: #{tpu_custom_call.1} parent=1 // pred_region
      _
    $region37: #{tpu_custom_call.1} parent=1 // pred_fallthru
      _
    // Predicated region
    $region38: #{tpu_custom_call.1} parent=1 // pred_check
      _
    $region39: #{tpu_custom_call.1} parent=1 // pred_check_branch
      %105 = sbr.rel (0) target = $region41
    $region40: #{tpu_custom_call.1} parent=1 // pred_region
      _
    $region41: #{tpu_custom_call.1} parent=1 // pred_fallthru
      _
    // Predicated region
    $region42: #{tpu_custom_call.1} parent=1 // pred_check
      _
    $region43: #{tpu_custom_call.1} parent=1 // pred_check_branch
      %107 = sbr.rel (0) target = $region45
    $region44: #{tpu_custom_call.1} parent=1 // pred_region
      _
    $region45: #{tpu_custom_call.1} parent=1 // pred_fallthru
      _
    // Predicated region
    $region46: #{tpu_custom_call.1} parent=1 // pred_check
      _
    $region47: #{tpu_custom_call.1} parent=1 // pred_check_branch
      %109 = sbr.rel (0) target = $region49
    $region48: #{tpu_custom_call.1} parent=1 // pred_region
      %110 = dma.done [#allocation4], 256
    $region49: #{tpu_custom_call.1} parent=1 // pred_fallthru
      _
    // Predicated region
    $region50: #{tpu_custom_call.1} parent=1 // pred_check
      _
    $region51: #{tpu_custom_call.1} parent=1 // pred_check_branch
      %112 = sbr.rel (0) target = $region53
    $region52: #{tpu_custom_call.1} parent=1 // pred_region
      %113 = dma.done [#allocation7], 256
    $region53: #{tpu_custom_call.1} parent=1 // pred_fallthru
      _
    // Predicated region
    $region54: #{tpu_custom_call.1} parent=1 // pred_check
      _
    $region55: #{tpu_custom_call.1} parent=1 // pred_check_branch
      %115 = sbr.rel (0) target = $region57
    $region56: #{tpu_custom_call.1} parent=1 // pred_region
      %116 = dma.done [#allocation7], 256
    $region57: #{tpu_custom_call.1} parent=1 // pred_fallthru
      _
    // Predicated region
    $region58: #{tpu_custom_call.1} parent=1 // pred_check
      _
    $region59: #{tpu_custom_call.1} parent=1 // pred_check_branch
      %118 = sbr.rel (0) target = $region61
    $region60: #{tpu_custom_call.1} parent=1 // pred_region
      %119 = dma.done [#allocation10], 256
    $region61: #{tpu_custom_call.1} parent=1 // pred_fallthru
      _
    // Predicated region
    $region62: #{tpu_custom_call.1} parent=1 // pred_check
      _
    $region63: #{tpu_custom_call.1} parent=1 // pred_check_branch
      %121 = sbr.rel (0) target = $region65
    $region64: #{tpu_custom_call.1} parent=1 // pred_region
      %122 = dma.done [#allocation10], 8192
    $region65: #{tpu_custom_call.1} parent=1 // pred_fallthru
      _
    // Predicated region
    $region66: #{tpu_custom_call.1} parent=1 // pred_check
      _
    $region67: #{tpu_custom_call.1} parent=1 // pred_check_branch
      %124 = sbr.rel (0) target = $region69
    $region68: #{tpu_custom_call.1} parent=1 // pred_region
      %125 = dma.done [#allocation13], 8192
    $region69: #{tpu_custom_call.1} parent=1 // pred_fallthru
      _
    %v127 = vld [vmem:[#allocation3] sm:$0xff]
    %v128 = vld [vmem:[#allocation3 + $0x8] sm:$0xff]
    %v129 = vld [vmem:[#allocation6] sm:$0xff]
    %v130 = vld [vmem:[#allocation6 + $0x8] sm:$0xff]
    %v131 = vadd.f32 %v127, %v129
    %v132 = vadd.f32 %v128, %v130
    %v133 = vpack.c.bf16 %v132, %v131
    %v134 = vld [vmem:[#allocation9] sm:$0xf]
    %v135 = vld [vmem:[#allocation9 + $0x4] sm:$0xf]
    %v136 = vld [vmem:[#allocation9 + $0x8] sm:$0xf]
    %v137 = vld [vmem:[#allocation9 + $0xc] sm:$0xf]
    %v138 = vld [vmem:[%s4] sm:$0x1]
    %v140 = vlaneseq
    %v141 = vshrl.u32 %v140, 7
    %v142 = vsub.s32 0, %v141
    %v143 = vrot.slane %v138, %v142
    %v149 = vunpack.c.l.b16 %v134
    %v150 = vunpack.c.l.b16 %v135
    %v151 = vunpack.c.l.b16 %v136
    %v152 = vunpack.c.l.b16 %v137
    %v153 = vpack.c.b16 %v150, %v149
    %v154 = vpack.c.b16 %v152, %v151
    %vm157 = vcmask 261120
    %v159 = vsel %vm157, %v133, 0
    %161 = vmatprep.subr.bf16.mxu0 0
    %162 = vmatpush1.bf16.msra.mxu0 0
    %163 = vmatprep.subr.bf16.mxu0 0
    %164 = vmatpush1.bf16.msra.mxu0 0
    %165 = vmatprep.subr.bf16.mxu0 0
    %166 = vmatpush1.bf16.msra.mxu0 0
    %167 = vmatprep.subr.bf16.mxu0 0
    %168 = vmatpush1.bf16.msra.mxu0 0
    %169 = vmatprep.subr.bf16.mxu0 0
    %170 = vmatpush1.bf16.msra.mxu0 0
    %171 = vmatprep.subr.bf16.mxu0 0
    %172 = vmatpush1.bf16.msra.mxu0 0
    %173 = vmatprep.subr.bf16.mxu0 0
    %174 = vmatpush1.bf16.msra.mxu0 %v154
    %175 = vmatprep.subr.bf16.mxu0 0
    %176 = vmatpush1.bf16.msra.mxu0 %v153
    %177 = vmatprep.subr.bf16.mxu0 0
    %178 = vmatpush2.bf16.msra.mxu0 0
    %179 = vmatprep.subr.bf16.mxu0 0
    %180 = vmatpush2.bf16.msra.mxu0 0
    %181 = vmatprep.subr.bf16.mxu0 0
    %182 = vmatpush2.bf16.msra.mxu0 0
    %183 = vmatprep.subr.bf16.mxu0 0
    %184 = vmatpush2.bf16.msra.mxu0 0
    %185 = vmatprep.subr.bf16.mxu0 0
    %186 = vmatpush2.bf16.msra.mxu0 0
    %187 = vmatprep.subr.bf16.mxu0 0
    %188 = vmatpush2.bf16.msra.mxu0 0
    %189 = vmatprep.subr.bf16.mxu0 0
    %190 = vmatpush2.bf16.msra.mxu0 0
    %191 = vmatprep.subr.bf16.mxu0 0
    %192 = vmatpush2.bf16.msra.mxu0 0
    %193 = vmatprep.mubr.bf16.mxu0 0
    %194 = vmatmul.mubr.bf16.gmra.mxu0 %v159
    %v195 = vpop.f32.mrf.mxu0
    %v196 = vadd.f32 %v143, %v195
    %v197 = vpop.f32.mrf.mxu0
    %v198 = vpop.f32.mrf.mxu0
    %v199 = vadd.f32 %v143, %v198
    %v200 = vpop.f32.mrf.mxu0
    %201 = vdwg.mxu0
    %v202 = vmax.f32 %v196, 0.0
    %v203 = vmax.f32 %v199, 0.0
    %v204 = vpack.c.bf16 %v203, %v202
    %v205 = vld [vmem:[#allocation11] sm:$0xff]
    %v206 = vld [vmem:[#allocation11 + $0x8] sm:$0xff]
    %v207 = vld [vmem:[#allocation11 + $0x10] sm:$0xff]
    %v208 = vld [vmem:[#allocation11 + $0x18] sm:$0xff]
    %v209 = vld [vmem:[#allocation11 + $0x20] sm:$0xff]
    %v210 = vld [vmem:[#allocation11 + $0x28] sm:$0xff]
    %v211 = vld [vmem:[#allocation11 + $0x30] sm:$0xff]
    %v212 = vld [vmem:[#allocation11 + $0x38] sm:$0xff]
    %v213 = vld [vmem:[#allocation11 + $0x40] sm:$0xff]
    %v214 = vld [vmem:[#allocation11 + $0x48] sm:$0xff]
    %v215 = vld [vmem:[#allocation11 + $0x50] sm:$0xff]
    %v216 = vld [vmem:[#allocation11 + $0x58] sm:$0xff]
    %v217 = vld [vmem:[#allocation11 + $0x60] sm:$0xff]
    %v218 = vld [vmem:[#allocation11 + $0x68] sm:$0xff]
    %v219 = vld [vmem:[#allocation11 + $0x70] sm:$0xff]
    %v220 = vld [vmem:[#allocation11 + $0x78] sm:$0xff]
    %v221 = vld [vmem:[#allocation11 + $0x80] sm:$0xff]
    %v222 = vld [vmem:[#allocation11 + $0x88] sm:$0xff]
    %v223 = vld [vmem:[#allocation11 + $0x90] sm:$0xff]
    %v224 = vld [vmem:[#allocation11 + $0x98] sm:$0xff]
    %v225 = vld [vmem:[#allocation11 + $0xa0] sm:$0xff]
    %v226 = vld [vmem:[#allocation11 + $0xa8] sm:$0xff]
    %v227 = vld [vmem:[#allocation11 + $0xb0] sm:$0xff]
    %v228 = vld [vmem:[#allocation11 + $0xb8] sm:$0xff]
    %v229 = vld [vmem:[#allocation11 + $0xc0] sm:$0xff]
    %v230 = vld [vmem:[#allocation11 + $0xc8] sm:$0xff]
    %v231 = vld [vmem:[#allocation11 + $0xd0] sm:$0xff]
    %v232 = vld [vmem:[#allocation11 + $0xd8] sm:$0xff]
    %v233 = vld [vmem:[#allocation11 + $0xe0] sm:$0xff]
    %v234 = vld [vmem:[#allocation11 + $0xe8] sm:$0xff]
    %v235 = vld [vmem:[#allocation11 + $0xf0] sm:$0xff]
    %v236 = vld [vmem:[#allocation11 + $0xf8] sm:$0xff]
    %v237 = vld [vmem:[#allocation11 + $0x100] sm:$0xff]
    %v238 = vld [vmem:[#allocation11 + $0x108] sm:$0xff]
    %v239 = vld [vmem:[#allocation11 + $0x110] sm:$0xff]
    %v240 = vld [vmem:[#allocation11 + $0x118] sm:$0xff]
    %v241 = vld [vmem:[#allocation11 + $0x120] sm:$0xff]
    %v242 = vld [vmem:[#allocation11 + $0x128] sm:$0xff]
    %v243 = vld [vmem:[#allocation11 + $0x130] sm:$0xff]
    %v244 = vld [vmem:[#allocation11 + $0x138] sm:$0xff]
    %v245 = vld [vmem:[#allocation11 + $0x140] sm:$0xff]
    %v246 = vld [vmem:[#allocation11 + $0x148] sm:$0xff]
    %v247 = vld [vmem:[#allocation11 + $0x150] sm:$0xff]
    %v248 = vld [vmem:[#allocation11 + $0x158] sm:$0xff]
    %v249 = vld [vmem:[#allocation11 + $0x160] sm:$0xff]
    %v250 = vld [vmem:[#allocation11 + $0x168] sm:$0xff]
    %v251 = vld [vmem:[#allocation11 + $0x170] sm:$0xff]
    %v252 = vld [vmem:[#allocation11 + $0x178] sm:$0xff]
    %v253 = vld [vmem:[#allocation11 + $0x180] sm:$0xff]
    %v254 = vld [vmem:[#allocation11 + $0x188] sm:$0xff]
    %v255 = vld [vmem:[#allocation11 + $0x190] sm:$0xff]
    %v256 = vld [vmem:[#allocation11 + $0x198] sm:$0xff]
    %v257 = vld [vmem:[#allocation11 + $0x1a0] sm:$0xff]
    %v258 = vld [vmem:[#allocation11 + $0x1a8] sm:$0xff]
    %v259 = vld [vmem:[#allocation11 + $0x1b0] sm:$0xff]
    %v260 = vld [vmem:[#allocation11 + $0x1b8] sm:$0xff]
    %v261 = vld [vmem:[#allocation11 + $0x1c0] sm:$0xff]
    %v262 = vld [vmem:[#allocation11 + $0x1c8] sm:$0xff]
    %v263 = vld [vmem:[#allocation11 + $0x1d0] sm:$0xff]
    %v264 = vld [vmem:[#allocation11 + $0x1d8] sm:$0xff]
    %v265 = vld [vmem:[#allocation11 + $0x1e0] sm:$0xff]
    %v266 = vld [vmem:[#allocation11 + $0x1e8] sm:$0xff]
    %v267 = vld [vmem:[#allocation11 + $0x1f0] sm:$0xff]
    %v268 = vld [vmem:[#allocation11 + $0x1f8] sm:$0xff]
    %v269 = vld [vmem:[%s6] sm:$0xff]
    %v271 = vlaneseq
    %v272 = vshrl.u32 %v271, 7
    %v273 = vsub.s32 0, %v272
    %v274 = vrot.slane %v269, %v273
    %v275 = vlaneseq
    %v276 = vshrl.u32 %v275, 7
    %v277 = vsub.s32 1, %v276
    %v278 = vrot.slane %v269, %v277
    %v279 = vlaneseq
    %v280 = vshrl.u32 %v279, 7
    %v281 = vsub.s32 2, %v280
    %v282 = vrot.slane %v269, %v281
    %v283 = vlaneseq
    %v284 = vshrl.u32 %v283, 7
    %v285 = vsub.s32 3, %v284
    %v286 = vrot.slane %v269, %v285
    %v287 = vlaneseq
    %v288 = vshrl.u32 %v287, 7
    %v289 = vsub.s32 4, %v288
    %v290 = vrot.slane %v269, %v289
    %v291 = vlaneseq
    %v292 = vshrl.u32 %v291, 7
    %v293 = vsub.s32 5, %v292
    %v294 = vrot.slane %v269, %v293
    %v295 = vlaneseq
    %v296 = vshrl.u32 %v295, 7
    %v297 = vsub.s32 6, %v296
    %v298 = vrot.slane %v269, %v297
    %v299 = vlaneseq
    %v300 = vshrl.u32 %v299, 7
    %v301 = vsub.s32 7, %v300
    %v302 = vrot.slane %v269, %v301
    %v375 = vunpack.c.l.b16 %v205
    %v376 = vunpack.c.h.b16 %v205
    %v377 = vunpack.c.l.b16 %v206
    %v378 = vunpack.c.h.b16 %v206
    %v379 = vunpack.c.l.b16 %v207
    %v380 = vunpack.c.h.b16 %v207
    %v381 = vunpack.c.l.b16 %v208
    %v382 = vunpack.c.h.b16 %v208
    %v383 = vunpack.c.l.b16 %v209
    %v384 = vunpack.c.h.b16 %v209
    %v385 = vunpack.c.l.b16 %v210
    %v386 = vunpack.c.h.b16 %v210
    %v387 = vunpack.c.l.b16 %v211
    %v388 = vunpack.c.h.b16 %v211
    %v389 = vunpack.c.l.b16 %v212
    %v390 = vunpack.c.h.b16 %v212
    %v391 = vunpack.c.l.b16 %v213
    %v392 = vunpack.c.h.b16 %v213
    %v393 = vunpack.c.l.b16 %v214
    %v394 = vunpack.c.h.b16 %v214
    %v395 = vunpack.c.l.b16 %v215
    %v396 = vunpack.c.h.b16 %v215
    %v397 = vunpack.c.l.b16 %v216
    %v398 = vunpack.c.h.b16 %v216
    %v399 = vunpack.c.l.b16 %v217
    %v400 = vunpack.c.h.b16 %v217
    %v401 = vunpack.c.l.b16 %v218
    %v402 = vunpack.c.h.b16 %v218
    %v403 = vunpack.c.l.b16 %v219
    %v404 = vunpack.c.h.b16 %v219
    %v405 = vunpack.c.l.b16 %v220
    %v406 = vunpack.c.h.b16 %v220
    %v407 = vunpack.c.l.b16 %v221
    %v408 = vunpack.c.h.b16 %v221
    %v409 = vunpack.c.l.b16 %v222
    %v410 = vunpack.c.h.b16 %v222
    %v411 = vunpack.c.l.b16 %v223
    %v412 = vunpack.c.h.b16 %v223
    %v413 = vunpack.c.l.b16 %v224
    %v414 = vunpack.c.h.b16 %v224
    %v415 = vunpack.c.l.b16 %v225
    %v416 = vunpack.c.h.b16 %v225
    %v417 = vunpack.c.l.b16 %v226
    %v418 = vunpack.c.h.b16 %v226
    %v419 = vunpack.c.l.b16 %v227
    %v420 = vunpack.c.h.b16 %v227
    %v421 = vunpack.c.l.b16 %v228
    %v422 = vunpack.c.h.b16 %v228
    %v423 = vunpack.c.l.b16 %v229
    %v424 = vunpack.c.h.b16 %v229
    %v425 = vunpack.c.l.b16 %v230
    %v426 = vunpack.c.h.b16 %v230
    %v427 = vunpack.c.l.b16 %v231
    %v428 = vunpack.c.h.b16 %v231
    %v429 = vunpack.c.l.b16 %v232
    %v430 = vunpack.c.h.b16 %v232
    %v431 = vunpack.c.l.b16 %v233
    %v432 = vunpack.c.h.b16 %v233
    %v433 = vunpack.c.l.b16 %v234
    %v434 = vunpack.c.h.b16 %v234
    %v435 = vunpack.c.l.b16 %v235
    %v436 = vunpack.c.h.b16 %v235
    %v437 = vunpack.c.l.b16 %v236
    %v438 = vunpack.c.h.b16 %v236
    %v439 = vunpack.c.l.b16 %v237
    %v440 = vunpack.c.h.b16 %v237
    %v441 = vunpack.c.l.b16 %v238
    %v442 = vunpack.c.h.b16 %v238
    %v443 = vunpack.c.l.b16 %v239
    %v444 = vunpack.c.h.b16 %v239
    %v445 = vunpack.c.l.b16 %v240
    %v446 = vunpack.c.h.b16 %v240
    %v447 = vunpack.c.l.b16 %v241
    %v448 = vunpack.c.h.b16 %v241
    %v449 = vunpack.c.l.b16 %v242
    %v450 = vunpack.c.h.b16 %v242
    %v451 = vunpack.c.l.b16 %v243
    %v452 = vunpack.c.h.b16 %v243
    %v453 = vunpack.c.l.b16 %v244
    %v454 = vunpack.c.h.b16 %v244
    %v455 = vunpack.c.l.b16 %v245
    %v456 = vunpack.c.h.b16 %v245
    %v457 = vunpack.c.l.b16 %v246
    %v458 = vunpack.c.h.b16 %v246
    %v459 = vunpack.c.l.b16 %v247
    %v460 = vunpack.c.h.b16 %v247
    %v461 = vunpack.c.l.b16 %v248
    %v462 = vunpack.c.h.b16 %v248
    %v463 = vunpack.c.l.b16 %v249
    %v464 = vunpack.c.h.b16 %v249
    %v465 = vunpack.c.l.b16 %v250
    %v466 = vunpack.c.h.b16 %v250
    %v467 = vunpack.c.l.b16 %v251
    %v468 = vunpack.c.h.b16 %v251
    %v469 = vunpack.c.l.b16 %v252
    %v470 = vunpack.c.h.b16 %v252
    %v471 = vunpack.c.l.b16 %v253
    %v472 = vunpack.c.h.b16 %v253
    %v473 = vunpack.c.l.b16 %v254
    %v474 = vunpack.c.h.b16 %v254
    %v475 = vunpack.c.l.b16 %v255
    %v476 = vunpack.c.h.b16 %v255
    %v477 = vunpack.c.l.b16 %v256
    %v478 = vunpack.c.h.b16 %v256
    %v479 = vunpack.c.l.b16 %v257
    %v480 = vunpack.c.h.b16 %v257
    %v481 = vunpack.c.l.b16 %v258
    %v482 = vunpack.c.h.b16 %v258
    %v483 = vunpack.c.l.b16 %v259
    %v484 = vunpack.c.h.b16 %v259
    %v485 = vunpack.c.l.b16 %v260
    %v486 = vunpack.c.h.b16 %v260
    %v487 = vunpack.c.l.b16 %v261
    %v488 = vunpack.c.h.b16 %v261
    %v489 = vunpack.c.l.b16 %v262
    %v490 = vunpack.c.h.b16 %v262
    %v491 = vunpack.c.l.b16 %v263
    %v492 = vunpack.c.h.b16 %v263
    %v493 = vunpack.c.l.b16 %v264
    %v494 = vunpack.c.h.b16 %v264
    %v495 = vunpack.c.l.b16 %v265
    %v496 = vunpack.c.h.b16 %v265
    %v497 = vunpack.c.l.b16 %v266
    %v498 = vunpack.c.h.b16 %v266
    %v499 = vunpack.c.l.b16 %v267
    %v500 = vunpack.c.h.b16 %v267
    %v501 = vunpack.c.l.b16 %v268
    %v502 = vunpack.c.h.b16 %v268
    %v503 = vpack.c.b16 %v383, %v375
    %v504 = vpack.c.b16 %v384, %v376
    %v505 = vpack.c.b16 %v385, %v377
    %v506 = vpack.c.b16 %v386, %v378
    %v507 = vpack.c.b16 %v387, %v379
    %v508 = vpack.c.b16 %v388, %v380
    %v509 = vpack.c.b16 %v389, %v381
    %v510 = vpack.c.b16 %v390, %v382
    %v511 = vpack.c.b16 %v399, %v391
    %v512 = vpack.c.b16 %v400, %v392
    %v513 = vpack.c.b16 %v401, %v393
    %v514 = vpack.c.b16 %v402, %v394
    %v515 = vpack.c.b16 %v403, %v395
    %v516 = vpack.c.b16 %v404, %v396
    %v517 = vpack.c.b16 %v405, %v397
    %v518 = vpack.c.b16 %v406, %v398
    %v519 = vpack.c.b16 %v415, %v407
    %v520 = vpack.c.b16 %v416, %v408
    %v521 = vpack.c.b16 %v417, %v409
    %v522 = vpack.c.b16 %v418, %v410
    %v523 = vpack.c.b16 %v419, %v411
    %v524 = vpack.c.b16 %v420, %v412
    %v525 = vpack.c.b16 %v421, %v413
    %v526 = vpack.c.b16 %v422, %v414
    %v527 = vpack.c.b16 %v431, %v423
    %v528 = vpack.c.b16 %v432, %v424
    %v529 = vpack.c.b16 %v433, %v425
    %v530 = vpack.c.b16 %v434, %v426
    %v531 = vpack.c.b16 %v435, %v427
    %v532 = vpack.c.b16 %v436, %v428
    %v533 = vpack.c.b16 %v437, %v429
    %v534 = vpack.c.b16 %v438, %v430
    %v535 = vpack.c.b16 %v447, %v439
    %v536 = vpack.c.b16 %v448, %v440
    %v537 = vpack.c.b16 %v449, %v441
    %v538 = vpack.c.b16 %v450, %v442
    %v539 = vpack.c.b16 %v451, %v443
    %v540 = vpack.c.b16 %v452, %v444
    %v541 = vpack.c.b16 %v453, %v445
    %v542 = vpack.c.b16 %v454, %v446
    %v543 = vpack.c.b16 %v463, %v455
    %v544 = vpack.c.b16 %v464, %v456
    %v545 = vpack.c.b16 %v465, %v457
    %v546 = vpack.c.b16 %v466, %v458
    %v547 = vpack.c.b16 %v467, %v459
    %v548 = vpack.c.b16 %v468, %v460
    %v549 = vpack.c.b16 %v469, %v461
    %v550 = vpack.c.b16 %v470, %v462
    %v551 = vpack.c.b16 %v479, %v471
    %v552 = vpack.c.b16 %v480, %v472
    %v553 = vpack.c.b16 %v481, %v473
    %v554 = vpack.c.b16 %v482, %v474
    %v555 = vpack.c.b16 %v483, %v475
    %v556 = vpack.c.b16 %v484, %v476
    %v557 = vpack.c.b16 %v485, %v477
    %v558 = vpack.c.b16 %v486, %v478
    %v559 = vpack.c.b16 %v495, %v487
    %v560 = vpack.c.b16 %v496, %v488
    %v561 = vpack.c.b16 %v497, %v489
    %v562 = vpack.c.b16 %v498, %v490
    %v563 = vpack.c.b16 %v499, %v491
    %v564 = vpack.c.b16 %v500, %v492
    %v565 = vpack.c.b16 %v501, %v493
    %v566 = vpack.c.b16 %v502, %v494
    %631 = vmatprep.subr.bf16.mxu0 %v560
    %632 = vmatpush1.bf16.msra.mxu0 %v559
    %633 = vmatprep.subr.bf16.mxu0 %v552
    %634 = vmatpush1.bf16.msra.mxu0 %v551
    %635 = vmatprep.subr.bf16.mxu0 %v544
    %636 = vmatpush1.bf16.msra.mxu0 %v543
    %637 = vmatprep.subr.bf16.mxu0 %v536
    %638 = vmatpush1.bf16.msra.mxu0 %v535
    %639 = vmatprep.subr.bf16.mxu0 %v528
    %640 = vmatpush1.bf16.msra.mxu0 %v527
    %641 = vmatprep.subr.bf16.mxu0 %v520
    %642 = vmatpush1.bf16.msra.mxu0 %v519
    %643 = vmatprep.subr.bf16.mxu0 %v512
    %644 = vmatpush1.bf16.msra.mxu0 %v511
    %645 = vmatprep.subr.bf16.mxu0 %v504
    %646 = vmatpush1.bf16.msra.mxu0 %v503
    %647 = vmatprep.subr.bf16.mxu0 0
    %648 = vmatpush2.bf16.msra.mxu0 0
    %649 = vmatprep.subr.bf16.mxu0 0
    %650 = vmatpush2.bf16.msra.mxu0 0
    %651 = vmatprep.subr.bf16.mxu0 0
    %652 = vmatpush2.bf16.msra.mxu0 0
    %653 = vmatprep.subr.bf16.mxu0 0
    %654 = vmatpush2.bf16.msra.mxu0 0
    %655 = vmatprep.subr.bf16.mxu0 0
    %656 = vmatpush2.bf16.msra.mxu0 0
    %657 = vmatprep.subr.bf16.mxu0 0
    %658 = vmatpush2.bf16.msra.mxu0 0
    %659 = vmatprep.subr.bf16.mxu0 0
    %660 = vmatpush2.bf16.msra.mxu0 0
    %661 = vmatprep.subr.bf16.mxu0 0
    %662 = vmatpush2.bf16.msra.mxu0 0
    %663 = vmatprep.mubr.bf16.mxu0 0
    %664 = vmatmul.mubr.bf16.gmra.mxu0 %v204
    %v665 = vpop.f32.mrf.mxu0
    %v666 = vadd.f32 %v274, %v665
    %v667 = vpop.f32.mrf.mxu0
    %v668 = vadd.f32 %v278, %v667
    %v669 = vpop.f32.mrf.mxu0
    %v670 = vadd.f32 %v274, %v669
    %v671 = vpop.f32.mrf.mxu0
    %v672 = vadd.f32 %v278, %v671
    %673 = vdwg.mxu0
    %674 = vmatprep.subr.bf16.mxu0 %v562
    %675 = vmatpush1.bf16.msra.mxu0 %v561
    %676 = vmatprep.subr.bf16.mxu0 %v554
    %677 = vmatpush1.bf16.msra.mxu0 %v553
    %678 = vmatprep.subr.bf16.mxu0 %v546
    %679 = vmatpush1.bf16.msra.mxu0 %v545
    %680 = vmatprep.subr.bf16.mxu0 %v538
    %681 = vmatpush1.bf16.msra.mxu0 %v537
    %682 = vmatprep.subr.bf16.mxu0 %v530
    %683 = vmatpush1.bf16.msra.mxu0 %v529
    %684 = vmatprep.subr.bf16.mxu0 %v522
    %685 = vmatpush1.bf16.msra.mxu0 %v521
    %686 = vmatprep.subr.bf16.mxu0 %v514
    %687 = vmatpush1.bf16.msra.mxu0 %v513
    %688 = vmatprep.subr.bf16.mxu0 %v506
    %689 = vmatpush1.bf16.msra.mxu0 %v505
    %690 = vmatprep.subr.bf16.mxu0 0
    %691 = vmatpush2.bf16.msra.mxu0 0
    %692 = vmatprep.subr.bf16.mxu0 0
    %693 = vmatpush2.bf16.msra.mxu0 0
    %694 = vmatprep.subr.bf16.mxu0 0
    %695 = vmatpush2.bf16.msra.mxu0 0
    %696 = vmatprep.subr.bf16.mxu0 0
    %697 = vmatpush2.bf16.msra.mxu0 0
    %698 = vmatprep.subr.bf16.mxu0 0
    %699 = vmatpush2.bf16.msra.mxu0 0
    %700 = vmatprep.subr.bf16.mxu0 0
    %701 = vmatpush2.bf16.msra.mxu0 0
    %702 = vmatprep.subr.bf16.mxu0 0
    %703 = vmatpush2.bf16.msra.mxu0 0
    %704 = vmatprep.subr.bf16.mxu0 0
    %705 = vmatpush2.bf16.msra.mxu0 0
    %706 = vmatprep.mubr.bf16.mxu0 0
    %707 = vmatmul.mubr.bf16.gmra.mxu0 %v204
    %v708 = vpop.f32.mrf.mxu0
    %v709 = vadd.f32 %v282, %v708
    %v710 = vpop.f32.mrf.mxu0
    %v711 = vadd.f32 %v286, %v710
    %v712 = vpop.f32.mrf.mxu0
    %v713 = vadd.f32 %v282, %v712
    %v714 = vpop.f32.mrf.mxu0
    %v715 = vadd.f32 %v286, %v714
    %716 = vdwg.mxu0
    %717 = vmatprep.subr.bf16.mxu0 %v564
    %718 = vmatpush1.bf16.msra.mxu0 %v563
    %719 = vmatprep.subr.bf16.mxu0 %v556
    %720 = vmatpush1.bf16.msra.mxu0 %v555
    %721 = vmatprep.subr.bf16.mxu0 %v548
    %722 = vmatpush1.bf16.msra.mxu0 %v547
    %723 = vmatprep.subr.bf16.mxu0 %v540
    %724 = vmatpush1.bf16.msra.mxu0 %v539
    %725 = vmatprep.subr.bf16.mxu0 %v532
    %726 = vmatpush1.bf16.msra.mxu0 %v531
    %727 = vmatprep.subr.bf16.mxu0 %v524
    %728 = vmatpush1.bf16.msra.mxu0 %v523
    %729 = vmatprep.subr.bf16.mxu0 %v516
    %730 = vmatpush1.bf16.msra.mxu0 %v515
    %731 = vmatprep.subr.bf16.mxu0 %v508
    %732 = vmatpush1.bf16.msra.mxu0 %v507
    %733 = vmatprep.subr.bf16.mxu0 0
    %734 = vmatpush2.bf16.msra.mxu0 0
    %735 = vmatprep.subr.bf16.mxu0 0
    %736 = vmatpush2.bf16.msra.mxu0 0
    %737 = vmatprep.subr.bf16.mxu0 0
    %738 = vmatpush2.bf16.msra.mxu0 0
    %739 = vmatprep.subr.bf16.mxu0 0
    %740 = vmatpush2.bf16.msra.mxu0 0
    %741 = vmatprep.subr.bf16.mxu0 0
    %742 = vmatpush2.bf16.msra.mxu0 0
    %743 = vmatprep.subr.bf16.mxu0 0
    %744 = vmatpush2.bf16.msra.mxu0 0
    %745 = vmatprep.subr.bf16.mxu0 0
    %746 = vmatpush2.bf16.msra.mxu0 0
    %747 = vmatprep.subr.bf16.mxu0 0
    %748 = vmatpush2.bf16.msra.mxu0 0
    %749 = vmatprep.mubr.bf16.mxu0 0
    %750 = vmatmul.mubr.bf16.gmra.mxu0 %v204
    %v751 = vpop.f32.mrf.mxu0
    %v752 = vadd.f32 %v290, %v751
    %v753 = vpop.f32.mrf.mxu0
    %v754 = vadd.f32 %v294, %v753
    %v755 = vpop.f32.mrf.mxu0
    %v756 = vadd.f32 %v290, %v755
    %v757 = vpop.f32.mrf.mxu0
    %v758 = vadd.f32 %v294, %v757
    %759 = vdwg.mxu0
    %760 = vmatprep.subr.bf16.mxu0 %v566
    %761 = vmatpush1.bf16.msra.mxu0 %v565
    %762 = vmatprep.subr.bf16.mxu0 %v558
    %763 = vmatpush1.bf16.msra.mxu0 %v557
    %764 = vmatprep.subr.bf16.mxu0 %v550
    %765 = vmatpush1.bf16.msra.mxu0 %v549
    %766 = vmatprep.subr.bf16.mxu0 %v542
    %767 = vmatpush1.bf16.msra.mxu0 %v541
    %768 = vmatprep.subr.bf16.mxu0 %v534
    %769 = vmatpush1.bf16.msra.mxu0 %v533
    %770 = vmatprep.subr.bf16.mxu0 %v526
    %771 = vmatpush1.bf16.msra.mxu0 %v525
    %772 = vmatprep.subr.bf16.mxu0 %v518
    %773 = vmatpush1.bf16.msra.mxu0 %v517
    %774 = vmatprep.subr.bf16.mxu0 %v510
    %775 = vmatpush1.bf16.msra.mxu0 %v509
    %776 = vmatprep.subr.bf16.mxu0 0
    %777 = vmatpush2.bf16.msra.mxu0 0
    %778 = vmatprep.subr.bf16.mxu0 0
    %779 = vmatpush2.bf16.msra.mxu0 0
    %780 = vmatprep.subr.bf16.mxu0 0
    %781 = vmatpush2.bf16.msra.mxu0 0
    %782 = vmatprep.subr.bf16.mxu0 0
    %783 = vmatpush2.bf16.msra.mxu0 0
    %784 = vmatprep.subr.bf16.mxu0 0
    %785 = vmatpush2.bf16.msra.mxu0 0
    %786 = vmatprep.subr.bf16.mxu0 0
    %787 = vmatpush2.bf16.msra.mxu0 0
    %788 = vmatprep.subr.bf16.mxu0 0
    %789 = vmatpush2.bf16.msra.mxu0 0
    %790 = vmatprep.subr.bf16.mxu0 0
    %791 = vmatpush2.bf16.msra.mxu0 0
    %792 = vmatprep.mubr.bf16.mxu0 0
    %793 = vmatmul.mubr.bf16.gmra.mxu0 %v204
    %v794 = vpop.f32.mrf.mxu0
    %v795 = vadd.f32 %v298, %v794
    %v796 = vpop.f32.mrf.mxu0
    %v797 = vadd.f32 %v302, %v796
    %v798 = vpop.f32.mrf.mxu0
    %v799 = vadd.f32 %v298, %v798
    %v800 = vpop.f32.mrf.mxu0
    %v801 = vadd.f32 %v302, %v800
    %802 = vdwg.mxu0
    %v803 = vtanh.pop %v666
    %v804 = vtanh.pop %v668
    %v805 = vtanh.pop %v709
    %v806 = vtanh.pop %v711
    %v807 = vtanh.pop %v752
    %v808 = vtanh.pop %v754
    %v809 = vtanh.pop %v795
    %v810 = vtanh.pop %v797
    %v811 = vtanh.pop %v670
    %v812 = vtanh.pop %v672
    %v813 = vtanh.pop %v713
    %v814 = vtanh.pop %v715
    %v815 = vtanh.pop %v756
    %v816 = vtanh.pop %v758
    %v817 = vtanh.pop %v799
    %v818 = vtanh.pop %v801
    %v819 = vpack.c.bf16 %v811, %v803
    %v820 = vpack.c.bf16 %v812, %v804
    %v821 = vpack.c.bf16 %v813, %v805
    %v822 = vpack.c.bf16 %v814, %v806
    %v823 = vpack.c.bf16 %v815, %v807
    %v824 = vpack.c.bf16 %v816, %v808
    %v825 = vpack.c.bf16 %v817, %v809
    %v826 = vpack.c.bf16 %v818, %v810
    %v827 = vld [vmem:[#allocation12] sm:$0xf]
    %v828 = vld [vmem:[#allocation12 + $0x4] sm:$0xf]
    %v829 = vld [vmem:[#allocation12 + $0x8] sm:$0xf]
    %v830 = vld [vmem:[#allocation12 + $0xc] sm:$0xf]
    %v831 = vld [vmem:[#allocation12 + $0x10] sm:$0xf]
    %v832 = vld [vmem:[#allocation12 + $0x14] sm:$0xf]
    %v833 = vld [vmem:[#allocation12 + $0x18] sm:$0xf]
    %v834 = vld [vmem:[#allocation12 + $0x1c] sm:$0xf]
    %v835 = vld [vmem:[#allocation12 + $0x20] sm:$0xf]
    %v836 = vld [vmem:[#allocation12 + $0x24] sm:$0xf]
    %v837 = vld [vmem:[#allocation12 + $0x28] sm:$0xf]
    %v838 = vld [vmem:[#allocation12 + $0x2c] sm:$0xf]
    %v839 = vld [vmem:[#allocation12 + $0x30] sm:$0xf]
    %v840 = vld [vmem:[#allocation12 + $0x34] sm:$0xf]
    %v841 = vld [vmem:[#allocation12 + $0x38] sm:$0xf]
    %v842 = vld [vmem:[#allocation12 + $0x3c] sm:$0xf]
    %v843 = vld [vmem:[#allocation12 + $0x40] sm:$0xf]
    %v844 = vld [vmem:[#allocation12 + $0x44] sm:$0xf]
    %v845 = vld [vmem:[#allocation12 + $0x48] sm:$0xf]
    %v846 = vld [vmem:[#allocation12 + $0x4c] sm:$0xf]
    %v847 = vld [vmem:[#allocation12 + $0x50] sm:$0xf]
    %v848 = vld [vmem:[#allocation12 + $0x54] sm:$0xf]
    %v849 = vld [vmem:[#allocation12 + $0x58] sm:$0xf]
    %v850 = vld [vmem:[#allocation12 + $0x5c] sm:$0xf]
    %v851 = vld [vmem:[#allocation12 + $0x60] sm:$0xf]
    %v852 = vld [vmem:[#allocation12 + $0x64] sm:$0xf]
    %v853 = vld [vmem:[#allocation12 + $0x68] sm:$0xf]
    %v854 = vld [vmem:[#allocation12 + $0x6c] sm:$0xf]
    %v855 = vld [vmem:[#allocation12 + $0x70] sm:$0xf]
    %v856 = vld [vmem:[#allocation12 + $0x74] sm:$0xf]
    %v857 = vld [vmem:[#allocation12 + $0x78] sm:$0xf]
    %v858 = vld [vmem:[#allocation12 + $0x7c] sm:$0xf]
    %v859 = vld [vmem:[#allocation12 + $0x80] sm:$0xf]
    %v860 = vld [vmem:[#allocation12 + $0x84] sm:$0xf]
    %v861 = vld [vmem:[#allocation12 + $0x88] sm:$0xf]
    %v862 = vld [vmem:[#allocation12 + $0x8c] sm:$0xf]
    %v863 = vld [vmem:[#allocation12 + $0x90] sm:$0xf]
    %v864 = vld [vmem:[#allocation12 + $0x94] sm:$0xf]
    %v865 = vld [vmem:[#allocation12 + $0x98] sm:$0xf]
    %v866 = vld [vmem:[#allocation12 + $0x9c] sm:$0xf]
    %v867 = vld [vmem:[#allocation12 + $0xa0] sm:$0xf]
    %v868 = vld [vmem:[#allocation12 + $0xa4] sm:$0xf]
    %v869 = vld [vmem:[#allocation12 + $0xa8] sm:$0xf]
    %v870 = vld [vmem:[#allocation12 + $0xac] sm:$0xf]
    %v871 = vld [vmem:[#allocation12 + $0xb0] sm:$0xf]
    %v872 = vld [vmem:[#allocation12 + $0xb4] sm:$0xf]
    %v873 = vld [vmem:[#allocation12 + $0xb8] sm:$0xf]
    %v874 = vld [vmem:[#allocation12 + $0xbc] sm:$0xf]
    %v875 = vld [vmem:[#allocation12 + $0xc0] sm:$0xf]
    %v876 = vld [vmem:[#allocation12 + $0xc4] sm:$0xf]
    %v877 = vld [vmem:[#allocation12 + $0xc8] sm:$0xf]
    %v878 = vld [vmem:[#allocation12 + $0xcc] sm:$0xf]
    %v879 = vld [vmem:[#allocation12 + $0xd0] sm:$0xf]
    %v880 = vld [vmem:[#allocation12 + $0xd4] sm:$0xf]
    %v881 = vld [vmem:[#allocation12 + $0xd8] sm:$0xf]
    %v882 = vld [vmem:[#allocation12 + $0xdc] sm:$0xf]
    %v883 = vld [vmem:[#allocation12 + $0xe0] sm:$0xf]
    %v884 = vld [vmem:[#allocation12 + $0xe4] sm:$0xf]
    %v885 = vld [vmem:[#allocation12 + $0xe8] sm:$0xf]
    %v886 = vld [vmem:[#allocation12 + $0xec] sm:$0xf]
    %v887 = vld [vmem:[#allocation12 + $0xf0] sm:$0xf]
    %v888 = vld [vmem:[#allocation12 + $0xf4] sm:$0xf]
    %v889 = vld [vmem:[#allocation12 + $0xf8] sm:$0xf]
    %v890 = vld [vmem:[#allocation12 + $0xfc] sm:$0xf]
    %v891 = vld [vmem:[#allocation12 + $0x100] sm:$0xf]
    %v892 = vld [vmem:[#allocation12 + $0x104] sm:$0xf]
    %v893 = vld [vmem:[#allocation12 + $0x108] sm:$0xf]
    %v894 = vld [vmem:[#allocation12 + $0x10c] sm:$0xf]
    %v895 = vld [vmem:[#allocation12 + $0x110] sm:$0xf]
    %v896 = vld [vmem:[#allocation12 + $0x114] sm:$0xf]
    %v897 = vld [vmem:[#allocation12 + $0x118] sm:$0xf]
    %v898 = vld [vmem:[#allocation12 + $0x11c] sm:$0xf]
    %v899 = vld [vmem:[#allocation12 + $0x120] sm:$0xf]
    %v900 = vld [vmem:[#allocation12 + $0x124] sm:$0xf]
    %v901 = vld [vmem:[#allocation12 + $0x128] sm:$0xf]
    %v902 = vld [vmem:[#allocation12 + $0x12c] sm:$0xf]
    %v903 = vld [vmem:[#allocation12 + $0x130] sm:$0xf]
    %v904 = vld [vmem:[#allocation12 + $0x134] sm:$0xf]
    %v905 = vld [vmem:[#allocation12 + $0x138] sm:$0xf]
    %v906 = vld [vmem:[#allocation12 + $0x13c] sm:$0xf]
    %v907 = vld [vmem:[#allocation12 + $0x140] sm:$0xf]
    %v908 = vld [vmem:[#allocation12 + $0x144] sm:$0xf]
    %v909 = vld [vmem:[#allocation12 + $0x148] sm:$0xf]
    %v910 = vld [vmem:[#allocation12 + $0x14c] sm:$0xf]
    %v911 = vld [vmem:[#allocation12 + $0x150] sm:$0xf]
    %v912 = vld [vmem:[#allocation12 + $0x154] sm:$0xf]
    %v913 = vld [vmem:[#allocation12 + $0x158] sm:$0xf]
    %v914 = vld [vmem:[#allocation12 + $0x15c] sm:$0xf]
    %v915 = vld [vmem:[#allocation12 + $0x160] sm:$0xf]
    %v916 = vld [vmem:[#allocation12 + $0x164] sm:$0xf]
    %v917 = vld [vmem:[#allocation12 + $0x168] sm:$0xf]
    %v918 = vld [vmem:[#allocation12 + $0x16c] sm:$0xf]
    %v919 = vld [vmem:[#allocation12 + $0x170] sm:$0xf]
    %v920 = vld [vmem:[#allocation12 + $0x174] sm:$0xf]
    %v921 = vld [vmem:[#allocation12 + $0x178] sm:$0xf]
    %v922 = vld [vmem:[#allocation12 + $0x17c] sm:$0xf]
    %v923 = vld [vmem:[#allocation12 + $0x180] sm:$0xf]
    %v924 = vld [vmem:[#allocation12 + $0x184] sm:$0xf]
    %v925 = vld [vmem:[#allocation12 + $0x188] sm:$0xf]
    %v926 = vld [vmem:[#allocation12 + $0x18c] sm:$0xf]
    %v927 = vld [vmem:[#allocation12 + $0x190] sm:$0xf]
    %v928 = vld [vmem:[#allocation12 + $0x194] sm:$0xf]
    %v929 = vld [vmem:[#allocation12 + $0x198] sm:$0xf]
    %v930 = vld [vmem:[#allocation12 + $0x19c] sm:$0xf]
    %v931 = vld [vmem:[#allocation12 + $0x1a0] sm:$0xf]
    %v932 = vld [vmem:[#allocation12 + $0x1a4] sm:$0xf]
    %v933 = vld [vmem:[#allocation12 + $0x1a8] sm:$0xf]
    %v934 = vld [vmem:[#allocation12 + $0x1ac] sm:$0xf]
    %v935 = vld [vmem:[#allocation12 + $0x1b0] sm:$0xf]
    %v936 = vld [vmem:[#allocation12 + $0x1b4] sm:$0xf]
    %v937 = vld [vmem:[#allocation12 + $0x1b8] sm:$0xf]
    %v938 = vld [vmem:[#allocation12 + $0x1bc] sm:$0xf]
    %v939 = vld [vmem:[#allocation12 + $0x1c0] sm:$0xf]
    %v940 = vld [vmem:[#allocation12 + $0x1c4] sm:$0xf]
    %v941 = vld [vmem:[#allocation12 + $0x1c8] sm:$0xf]
    %v942 = vld [vmem:[#allocation12 + $0x1cc] sm:$0xf]
    %v943 = vld [vmem:[#allocation12 + $0x1d0] sm:$0xf]
    %v944 = vld [vmem:[#allocation12 + $0x1d4] sm:$0xf]
    %v945 = vld [vmem:[#allocation12 + $0x1d8] sm:$0xf]
    %v946 = vld [vmem:[#allocation12 + $0x1dc] sm:$0xf]
    %v947 = vld [vmem:[#allocation12 + $0x1e0] sm:$0xf]
    %v948 = vld [vmem:[#allocation12 + $0x1e4] sm:$0xf]
    %v949 = vld [vmem:[#allocation12 + $0x1e8] sm:$0xf]
    %v950 = vld [vmem:[#allocation12 + $0x1ec] sm:$0xf]
    %v951 = vld [vmem:[#allocation12 + $0x1f0] sm:$0xf]
    %v952 = vld [vmem:[#allocation12 + $0x1f4] sm:$0xf]
    %v953 = vld [vmem:[#allocation12 + $0x1f8] sm:$0xf]
    %v954 = vld [vmem:[#allocation12 + $0x1fc] sm:$0xf]
    %v955 = vld [vmem:[%s8] sm:$0x1]
    %v957 = vlaneseq
    %v958 = vshrl.u32 %v957, 7
    %v959 = vsub.s32 0, %v958
    %v960 = vrot.slane %v955, %v959
    %v1090 = vunpack.c.l.b16 %v827
    %v1091 = vunpack.c.l.b16 %v828
    %v1092 = vunpack.c.l.b16 %v829
    %v1093 = vunpack.c.l.b16 %v830
    %v1094 = vunpack.c.l.b16 %v831
    %v1095 = vunpack.c.l.b16 %v832
    %v1096 = vunpack.c.l.b16 %v833
    %v1097 = vunpack.c.l.b16 %v834
    %v1098 = vunpack.c.l.b16 %v835
    %v1099 = vunpack.c.l.b16 %v836
    %v1100 = vunpack.c.l.b16 %v837
    %v1101 = vunpack.c.l.b16 %v838
    %v1102 = vunpack.c.l.b16 %v839
    %v1103 = vunpack.c.l.b16 %v840
    %v1104 = vunpack.c.l.b16 %v841
    %v1105 = vunpack.c.l.b16 %v842
    %v1106 = vunpack.c.l.b16 %v843
    %v1107 = vunpack.c.l.b16 %v844
    %v1108 = vunpack.c.l.b16 %v845
    %v1109 = vunpack.c.l.b16 %v846
    %v1110 = vunpack.c.l.b16 %v847
    %v1111 = vunpack.c.l.b16 %v848
    %v1112 = vunpack.c.l.b16 %v849
    %v1113 = vunpack.c.l.b16 %v850
    %v1114 = vunpack.c.l.b16 %v851
    %v1115 = vunpack.c.l.b16 %v852
    %v1116 = vunpack.c.l.b16 %v853
    %v1117 = vunpack.c.l.b16 %v854
    %v1118 = vunpack.c.l.b16 %v855
    %v1119 = vunpack.c.l.b16 %v856
    %v1120 = vunpack.c.l.b16 %v857
    %v1121 = vunpack.c.l.b16 %v858
    %v1122 = vunpack.c.l.b16 %v859
    %v1123 = vunpack.c.l.b16 %v860
    %v1124 = vunpack.c.l.b16 %v861
    %v1125 = vunpack.c.l.b16 %v862
    %v1126 = vunpack.c.l.b16 %v863
    %v1127 = vunpack.c.l.b16 %v864
    %v1128 = vunpack.c.l.b16 %v865
    %v1129 = vunpack.c.l.b16 %v866
    %v1130 = vunpack.c.l.b16 %v867
    %v1131 = vunpack.c.l.b16 %v868
    %v1132 = vunpack.c.l.b16 %v869
    %v1133 = vunpack.c.l.b16 %v870
    %v1134 = vunpack.c.l.b16 %v871
    %v1135 = vunpack.c.l.b16 %v872
    %v1136 = vunpack.c.l.b16 %v873
    %v1137 = vunpack.c.l.b16 %v874
    %v1138 = vunpack.c.l.b16 %v875
    %v1139 = vunpack.c.l.b16 %v876
    %v1140 = vunpack.c.l.b16 %v877
    %v1141 = vunpack.c.l.b16 %v878
    %v1142 = vunpack.c.l.b16 %v879
    %v1143 = vunpack.c.l.b16 %v880
    %v1144 = vunpack.c.l.b16 %v881
    %v1145 = vunpack.c.l.b16 %v882
    %v1146 = vunpack.c.l.b16 %v883
    %v1147 = vunpack.c.l.b16 %v884
    %v1148 = vunpack.c.l.b16 %v885
    %v1149 = vunpack.c.l.b16 %v886
    %v1150 = vunpack.c.l.b16 %v887
    %v1151 = vunpack.c.l.b16 %v888
    %v1152 = vunpack.c.l.b16 %v889
    %v1153 = vunpack.c.l.b16 %v890
    %v1154 = vunpack.c.l.b16 %v891
    %v1155 = vunpack.c.l.b16 %v892
    %v1156 = vunpack.c.l.b16 %v893
    %v1157 = vunpack.c.l.b16 %v894
    %v1158 = vunpack.c.l.b16 %v895
    %v1159 = vunpack.c.l.b16 %v896
    %v1160 = vunpack.c.l.b16 %v897
    %v1161 = vunpack.c.l.b16 %v898
    %v1162 = vunpack.c.l.b16 %v899
    %v1163 = vunpack.c.l.b16 %v900
    %v1164 = vunpack.c.l.b16 %v901
    %v1165 = vunpack.c.l.b16 %v902
    %v1166 = vunpack.c.l.b16 %v903
    %v1167 = vunpack.c.l.b16 %v904
    %v1168 = vunpack.c.l.b16 %v905
    %v1169 = vunpack.c.l.b16 %v906
    %v1170 = vunpack.c.l.b16 %v907
    %v1171 = vunpack.c.l.b16 %v908
    %v1172 = vunpack.c.l.b16 %v909
    %v1173 = vunpack.c.l.b16 %v910
    %v1174 = vunpack.c.l.b16 %v911
    %v1175 = vunpack.c.l.b16 %v912
    %v1176 = vunpack.c.l.b16 %v913
    %v1177 = vunpack.c.l.b16 %v914
    %v1178 = vunpack.c.l.b16 %v915
    %v1179 = vunpack.c.l.b16 %v916
    %v1180 = vunpack.c.l.b16 %v917
    %v1181 = vunpack.c.l.b16 %v918
    %v1182 = vunpack.c.l.b16 %v919
    %v1183 = vunpack.c.l.b16 %v920
    %v1184 = vunpack.c.l.b16 %v921
    %v1185 = vunpack.c.l.b16 %v922
    %v1186 = vunpack.c.l.b16 %v923
    %v1187 = vunpack.c.l.b16 %v924
    %v1188 = vunpack.c.l.b16 %v925
    %v1189 = vunpack.c.l.b16 %v926
    %v1190 = vunpack.c.l.b16 %v927
    %v1191 = vunpack.c.l.b16 %v928
    %v1192 = vunpack.c.l.b16 %v929
    %v1193 = vunpack.c.l.b16 %v930
    %v1194 = vunpack.c.l.b16 %v931
    %v1195 = vunpack.c.l.b16 %v932
    %v1196 = vunpack.c.l.b16 %v933
    %v1197 = vunpack.c.l.b16 %v934
    %v1198 = vunpack.c.l.b16 %v935
    %v1199 = vunpack.c.l.b16 %v936
    %v1200 = vunpack.c.l.b16 %v937
    %v1201 = vunpack.c.l.b16 %v938
    %v1202 = vunpack.c.l.b16 %v939
    %v1203 = vunpack.c.l.b16 %v940
    %v1204 = vunpack.c.l.b16 %v941
    %v1205 = vunpack.c.l.b16 %v942
    %v1206 = vunpack.c.l.b16 %v943
    %v1207 = vunpack.c.l.b16 %v944
    %v1208 = vunpack.c.l.b16 %v945
    %v1209 = vunpack.c.l.b16 %v946
    %v1210 = vunpack.c.l.b16 %v947
    %v1211 = vunpack.c.l.b16 %v948
    %v1212 = vunpack.c.l.b16 %v949
    %v1213 = vunpack.c.l.b16 %v950
    %v1214 = vunpack.c.l.b16 %v951
    %v1215 = vunpack.c.l.b16 %v952
    %v1216 = vunpack.c.l.b16 %v953
    %v1217 = vunpack.c.l.b16 %v954
    %v1218 = vpack.c.b16 %v1091, %v1090
    %v1219 = vpack.c.b16 %v1093, %v1092
    %v1220 = vpack.c.b16 %v1095, %v1094
    %v1221 = vpack.c.b16 %v1097, %v1096
    %v1222 = vpack.c.b16 %v1099, %v1098
    %v1223 = vpack.c.b16 %v1101, %v1100
    %v1224 = vpack.c.b16 %v1103, %v1102
    %v1225 = vpack.c.b16 %v1105, %v1104
    %v1226 = vpack.c.b16 %v1107, %v1106
    %v1227 = vpack.c.b16 %v1109, %v1108
    %v1228 = vpack.c.b16 %v1111, %v1110
    %v1229 = vpack.c.b16 %v1113, %v1112
    %v1230 = vpack.c.b16 %v1115, %v1114
    %v1231 = vpack.c.b16 %v1117, %v1116
    %v1232 = vpack.c.b16 %v1119, %v1118
    %v1233 = vpack.c.b16 %v1121, %v1120
    %v1234 = vpack.c.b16 %v1123, %v1122
    %v1235 = vpack.c.b16 %v1125, %v1124
    %v1236 = vpack.c.b16 %v1127, %v1126
    %v1237 = vpack.c.b16 %v1129, %v1128
    %v1238 = vpack.c.b16 %v1131, %v1130
    %v1239 = vpack.c.b16 %v1133, %v1132
    %v1240 = vpack.c.b16 %v1135, %v1134
    %v1241 = vpack.c.b16 %v1137, %v1136
    %v1242 = vpack.c.b16 %v1139, %v1138
    %v1243 = vpack.c.b16 %v1141, %v1140
    %v1244 = vpack.c.b16 %v1143, %v1142
    %v1245 = vpack.c.b16 %v1145, %v1144
    %v1246 = vpack.c.b16 %v1147, %v1146
    %v1247 = vpack.c.b16 %v1149, %v1148
    %v1248 = vpack.c.b16 %v1151, %v1150
    %v1249 = vpack.c.b16 %v1153, %v1152
    %v1250 = vpack.c.b16 %v1155, %v1154
    %v1251 = vpack.c.b16 %v1157, %v1156
    %v1252 = vpack.c.b16 %v1159, %v1158
    %v1253 = vpack.c.b16 %v1161, %v1160
    %v1254 = vpack.c.b16 %v1163, %v1162
    %v1255 = vpack.c.b16 %v1165, %v1164
    %v1256 = vpack.c.b16 %v1167, %v1166
    %v1257 = vpack.c.b16 %v1169, %v1168
    %v1258 = vpack.c.b16 %v1171, %v1170
    %v1259 = vpack.c.b16 %v1173, %v1172
    %v1260 = vpack.c.b16 %v1175, %v1174
    %v1261 = vpack.c.b16 %v1177, %v1176
    %v1262 = vpack.c.b16 %v1179, %v1178
    %v1263 = vpack.c.b16 %v1181, %v1180
    %v1264 = vpack.c.b16 %v1183, %v1182
    %v1265 = vpack.c.b16 %v1185, %v1184
    %v1266 = vpack.c.b16 %v1187, %v1186
    %v1267 = vpack.c.b16 %v1189, %v1188
    %v1268 = vpack.c.b16 %v1191, %v1190
    %v1269 = vpack.c.b16 %v1193, %v1192
    %v1270 = vpack.c.b16 %v1195, %v1194
    %v1271 = vpack.c.b16 %v1197, %v1196
    %v1272 = vpack.c.b16 %v1199, %v1198
    %v1273 = vpack.c.b16 %v1201, %v1200
    %v1274 = vpack.c.b16 %v1203, %v1202
    %v1275 = vpack.c.b16 %v1205, %v1204
    %v1276 = vpack.c.b16 %v1207, %v1206
    %v1277 = vpack.c.b16 %v1209, %v1208
    %v1278 = vpack.c.b16 %v1211, %v1210
    %v1279 = vpack.c.b16 %v1213, %v1212
    %v1280 = vpack.c.b16 %v1215, %v1214
    %v1281 = vpack.c.b16 %v1217, %v1216
    %1346 = vmatprep.subr.bf16.mxu0 0
    %1347 = vmatpush1.bf16.msra.mxu0 %v1225
    %1348 = vmatprep.subr.bf16.mxu0 0
    %1349 = vmatpush1.bf16.msra.mxu0 %v1224
    %1350 = vmatprep.subr.bf16.mxu0 0
    %1351 = vmatpush1.bf16.msra.mxu0 %v1223
    %1352 = vmatprep.subr.bf16.mxu0 0
    %1353 = vmatpush1.bf16.msra.mxu0 %v1222
    %1354 = vmatprep.subr.bf16.mxu0 0
    %1355 = vmatpush1.bf16.msra.mxu0 %v1221
    %1356 = vmatprep.subr.bf16.mxu0 0
    %1357 = vmatpush1.bf16.msra.mxu0 %v1220
    %1358 = vmatprep.subr.bf16.mxu0 0
    %1359 = vmatpush1.bf16.msra.mxu0 %v1219
    %1360 = vmatprep.subr.bf16.mxu0 0
    %1361 = vmatpush1.bf16.msra.mxu0 %v1218
    %1362 = vmatprep.subr.bf16.mxu0 0
    %1363 = vmatpush2.bf16.msra.mxu0 %v1233
    %1364 = vmatprep.subr.bf16.mxu0 0
    %1365 = vmatpush2.bf16.msra.mxu0 %v1232
    %1366 = vmatprep.subr.bf16.mxu0 0
    %1367 = vmatpush2.bf16.msra.mxu0 %v1231
    %1368 = vmatprep.subr.bf16.mxu0 0
    %1369 = vmatpush2.bf16.msra.mxu0 %v1230
    %1370 = vmatprep.subr.bf16.mxu0 0
    %1371 = vmatpush2.bf16.msra.mxu0 %v1229
    %1372 = vmatprep.subr.bf16.mxu0 0
    %1373 = vmatpush2.bf16.msra.mxu0 %v1228
    %1374 = vmatprep.subr.bf16.mxu0 0
    %1375 = vmatpush2.bf16.msra.mxu0 %v1227
    %1376 = vmatprep.subr.bf16.mxu0 0
    %1377 = vmatpush2.bf16.msra.mxu0 %v1226
    %1378 = vmatprep.mubr.bf16.mxu0 %v820
    %1379 = vmatmul.mubr.bf16.gmra.mxu0 %v819
    %v1380 = vpop.f32.mrf.mxu0
    %v1381 = vadd.f32 %v960, %v1380
    %v1382 = vpop.f32.mrf.mxu0
    %v1383 = vpop.f32.mrf.mxu0
    %v1384 = vadd.f32 %v960, %v1383
    %v1385 = vpop.f32.mrf.mxu0
    %1386 = vdwg.mxu0
    %1387 = vmatprep.subr.bf16.mxu0 0
    %1388 = vmatpush1.bf16.msra.mxu0 %v1241
    %1389 = vmatprep.subr.bf16.mxu0 0
    %1390 = vmatpush1.bf16.msra.mxu0 %v1240
    %1391 = vmatprep.subr.bf16.mxu0 0
    %1392 = vmatpush1.bf16.msra.mxu0 %v1239
    %1393 = vmatprep.subr.bf16.mxu0 0
    %1394 = vmatpush1.bf16.msra.mxu0 %v1238
    %1395 = vmatprep.subr.bf16.mxu0 0
    %1396 = vmatpush1.bf16.msra.mxu0 %v1237
    %1397 = vmatprep.subr.bf16.mxu0 0
    %1398 = vmatpush1.bf16.msra.mxu0 %v1236
    %1399 = vmatprep.subr.bf16.mxu0 0
    %1400 = vmatpush1.bf16.msra.mxu0 %v1235
    %1401 = vmatprep.subr.bf16.mxu0 0
    %1402 = vmatpush1.bf16.msra.mxu0 %v1234
    %1403 = vmatprep.subr.bf16.mxu0 0
    %1404 = vmatpush2.bf16.msra.mxu0 %v1249
    %1405 = vmatprep.subr.bf16.mxu0 0
    %1406 = vmatpush2.bf16.msra.mxu0 %v1248
    %1407 = vmatprep.subr.bf16.mxu0 0
    %1408 = vmatpush2.bf16.msra.mxu0 %v1247
    %1409 = vmatprep.subr.bf16.mxu0 0
    %1410 = vmatpush2.bf16.msra.mxu0 %v1246
    %1411 = vmatprep.subr.bf16.mxu0 0
    %1412 = vmatpush2.bf16.msra.mxu0 %v1245
    %1413 = vmatprep.subr.bf16.mxu0 0
    %1414 = vmatpush2.bf16.msra.mxu0 %v1244
    %1415 = vmatprep.subr.bf16.mxu0 0
    %1416 = vmatpush2.bf16.msra.mxu0 %v1243
    %1417 = vmatprep.subr.bf16.mxu0 0
    %1418 = vmatpush2.bf16.msra.mxu0 %v1242
    %1419 = vmatprep.mubr.bf16.mxu0 %v822
    %1420 = vmatmul.mubr.bf16.gmra.mxu0 %v821
    %v1421 = vpop.f32.mrf.mxu0
    %v1422 = vadd.f32 %v1381, %v1421
    %v1423 = vpop.f32.mrf.mxu0
    %v1424 = vpop.f32.mrf.mxu0
    %v1425 = vadd.f32 %v1384, %v1424
    %v1426 = vpop.f32.mrf.mxu0
    %1427 = vdwg.mxu0
    %1428 = vmatprep.subr.bf16.mxu0 0
    %1429 = vmatpush1.bf16.msra.mxu0 %v1257
    %1430 = vmatprep.subr.bf16.mxu0 0
    %1431 = vmatpush1.bf16.msra.mxu0 %v1256
    %1432 = vmatprep.subr.bf16.mxu0 0
    %1433 = vmatpush1.bf16.msra.mxu0 %v1255
    %1434 = vmatprep.subr.bf16.mxu0 0
    %1435 = vmatpush1.bf16.msra.mxu0 %v1254
    %1436 = vmatprep.subr.bf16.mxu0 0
    %1437 = vmatpush1.bf16.msra.mxu0 %v1253
    %1438 = vmatprep.subr.bf16.mxu0 0
    %1439 = vmatpush1.bf16.msra.mxu0 %v1252
    %1440 = vmatprep.subr.bf16.mxu0 0
    %1441 = vmatpush1.bf16.msra.mxu0 %v1251
    %1442 = vmatprep.subr.bf16.mxu0 0
    %1443 = vmatpush1.bf16.msra.mxu0 %v1250
    %1444 = vmatprep.subr.bf16.mxu0 0
    %1445 = vmatpush2.bf16.msra.mxu0 %v1265
    %1446 = vmatprep.subr.bf16.mxu0 0
    %1447 = vmatpush2.bf16.msra.mxu0 %v1264
    %1448 = vmatprep.subr.bf16.mxu0 0
    %1449 = vmatpush2.bf16.msra.mxu0 %v1263
    %1450 = vmatprep.subr.bf16.mxu0 0
    %1451 = vmatpush2.bf16.msra.mxu0 %v1262
    %1452 = vmatprep.subr.bf16.mxu0 0
    %1453 = vmatpush2.bf16.msra.mxu0 %v1261
    %1454 = vmatprep.subr.bf16.mxu0 0
    %1455 = vmatpush2.bf16.msra.mxu0 %v1260
    %1456 = vmatprep.subr.bf16.mxu0 0
    %1457 = vmatpush2.bf16.msra.mxu0 %v1259
    %1458 = vmatprep.subr.bf16.mxu0 0
    %1459 = vmatpush2.bf16.msra.mxu0 %v1258
    %1460 = vmatprep.mubr.bf16.mxu0 %v824
    %1461 = vmatmul.mubr.bf16.gmra.mxu0 %v823
    %v1462 = vpop.f32.mrf.mxu0
    %v1463 = vadd.f32 %v1422, %v1462
    %v1464 = vpop.f32.mrf.mxu0
    %v1465 = vpop.f32.mrf.mxu0
    %v1466 = vadd.f32 %v1425, %v1465
    %v1467 = vpop.f32.mrf.mxu0
    %1468 = vdwg.mxu0
    %1469 = vmatprep.subr.bf16.mxu0 0
    %1470 = vmatpush1.bf16.msra.mxu0 %v1273
    %1471 = vmatprep.subr.bf16.mxu0 0
    %1472 = vmatpush1.bf16.msra.mxu0 %v1272
    %1473 = vmatprep.subr.bf16.mxu0 0
    %1474 = vmatpush1.bf16.msra.mxu0 %v1271
    %1475 = vmatprep.subr.bf16.mxu0 0
    %1476 = vmatpush1.bf16.msra.mxu0 %v1270
    %1477 = vmatprep.subr.bf16.mxu0 0
    %1478 = vmatpush1.bf16.msra.mxu0 %v1269
    %1479 = vmatprep.subr.bf16.mxu0 0
    %1480 = vmatpush1.bf16.msra.mxu0 %v1268
    %1481 = vmatprep.subr.bf16.mxu0 0
    %1482 = vmatpush1.bf16.msra.mxu0 %v1267
    %1483 = vmatprep.subr.bf16.mxu0 0
    %1484 = vmatpush1.bf16.msra.mxu0 %v1266
    %1485 = vmatprep.subr.bf16.mxu0 0
    %1486 = vmatpush2.bf16.msra.mxu0 %v1281
    %1487 = vmatprep.subr.bf16.mxu0 0
    %1488 = vmatpush2.bf16.msra.mxu0 %v1280
    %1489 = vmatprep.subr.bf16.mxu0 0
    %1490 = vmatpush2.bf16.msra.mxu0 %v1279
    %1491 = vmatprep.subr.bf16.mxu0 0
    %1492 = vmatpush2.bf16.msra.mxu0 %v1278
    %1493 = vmatprep.subr.bf16.mxu0 0
    %1494 = vmatpush2.bf16.msra.mxu0 %v1277
    %1495 = vmatprep.subr.bf16.mxu0 0
    %1496 = vmatpush2.bf16.msra.mxu0 %v1276
    %1497 = vmatprep.subr.bf16.mxu0 0
    %1498 = vmatpush2.bf16.msra.mxu0 %v1275
    %1499 = vmatprep.subr.bf16.mxu0 0
    %1500 = vmatpush2.bf16.msra.mxu0 %v1274
    %1501 = vmatprep.mubr.bf16.mxu0 %v826
    %1502 = vmatmul.mubr.bf16.gmra.mxu0 %v825
    %v1503 = vpop.f32.mrf.mxu0
    %v1504 = vadd.f32 %v1463, %v1503
    %v1505 = vpop.f32.mrf.mxu0
    %v1506 = vpop.f32.mrf.mxu0
    %v1507 = vadd.f32 %v1466, %v1506
    %v1508 = vpop.f32.mrf.mxu0
    %1509 = vdwg.mxu0
    %v1510 = vmax.f32 %v1504, 0.0
    %v1511 = vmax.f32 %v1507, 0.0
    %1512 = vst [vmem:[#allocation15] sm:$0xff] %v1510
    %1513 = vst [vmem:[#allocation15 + $0x8] sm:$0xff] %v1511
    %v1514 = vld [vmem:[%s9] sm:$0x1]
    %v1515 = vld [vmem:[#allocation8] sm:$0xff]
    %v1516 = vld [vmem:[#allocation8 + $0x8] sm:$0xff]
    %v1518 = vlaneseq
    %v1519 = vshrl.u32 %v1518, 7
    %v1520 = vsub.s32 0, %v1519
    %v1521 = vrot.slane %v1514, %v1520
    %v1523 = vadd.f32 %v1521, %v1515
    %v1524 = vadd.f32 %v1521, %v1516
    %v1525 = vmul.f32 %v1510, %v1523
    %v1526 = vmul.f32 %v1511, %v1524
    %1527 = vadd.xlane.f32.xlu0 %v1525
    %v1528 = vpop.xlane.xlu0 %1527
    %1529 = vadd.xlane.f32.xlu0 %v1526
    %v1530 = vpop.xlane.xlu0 %1529
    %v1531 = vld [vmem:[#allocation2] sm:$0x1]
    %v1533 = vlaneseq
    %v1534 = vshrl.u32 %v1533, 7
    %v1535 = vsub.s32 0, %v1534
    %v1536 = vrot.slane %v1531, %v1535
    %v1538 = vadd.f32 %v1528, %v1536
    %v1539 = vadd.f32 %v1530, %v1536
    %1541 = vset.pattern.permute.xlu0 0
    %1542 = vperm.xlu0 %1541, %v1538
    %v1543 = vpop.permute.xlu0 %1542
    %1546 = vset.pattern.permute.xlu0 0
    %1547 = vperm.xlu0 %1546, %v1539
    %v1548 = vpop.permute.xlu0 %1547
    %1550 = vst [vmem:[#allocation14] sm:$0xff] %v1543
    %1551 = vst [vmem:[#allocation14 + $0x8] sm:$0xff] %v1548
    // Predicated region
    $region70: #{tpu_custom_call.1} parent=1 // pred_check
      _
    $region71: #{tpu_custom_call.1} parent=1 // pred_check_branch
      %1553 = sbr.rel (0) target = $region73
    $region72: #{tpu_custom_call.1} parent=1 // pred_region
      %s1555 = ssub.s32 256, 256
      %1556 = vsyncadd [#allocation5], %s1555
      %s1557 = sshll.u32 [#allocation14], 4
      %s1558 = int_to_ptr.vmem [resolvable:$true] %s1557
      %1563 = dma.vmem_to_hbm [thread:$0]  %s1558, 256, %s11, [#allocation5], 128, 128, 8
    $region73: #{tpu_custom_call.1} parent=1 // pred_fallthru
      _
    // Predicated region
    $region74: #{tpu_custom_call.1} parent=1 // pred_check
      _
    $region75: #{tpu_custom_call.1} parent=1 // pred_check_branch
      %1565 = sbr.rel (0) target = $region77
    $region76: #{tpu_custom_call.1} parent=1 // pred_region
      %s1567 = ssub.s32 256, 256
      %1568 = vsyncadd [#allocation16], %s1567
      %s1569 = sshll.u32 [#allocation15], 4
      %s1570 = int_to_ptr.vmem [resolvable:$true] %s1569
      %1575 = dma.vmem_to_hbm [thread:$0]  %s1570, 256, %s12, [#allocation16], 128, 128, 8
    $region77: #{tpu_custom_call.1} parent=1 // pred_fallthru
      _
    // Predicated region
    $region78: #{tpu_custom_call.1} parent=1 // pred_check
      _
    $region79: #{tpu_custom_call.1} parent=1 // pred_check_branch
      %1577 = sbr.rel (0) target = $region81
    $region80: #{tpu_custom_call.1} parent=1 // pred_region
      %1578 = dma.done [#allocation5], 256
    $region81: #{tpu_custom_call.1} parent=1 // pred_fallthru
      _
    // Predicated region
    $region82: #{tpu_custom_call.1} parent=1 // pred_check
      _
    $region83: #{tpu_custom_call.1} parent=1 // pred_check_branch
      %1580 = sbr.rel (0) target = $region85
    $region84: #{tpu_custom_call.1} parent=1 // pred_region
      %1581 = dma.done [#allocation16], 256
    $region85: #{tpu_custom_call.1} parent=1 // pred_fallthru
      _
    %1582 = vsyncpa [#allocation4], 1
    %1583 = vsyncpa [#allocation7], 1
    %1584 = vsyncpa [#allocation10], 1
    %1585 = vsyncpa [#allocation13], 1
    %1586 = vsyncpa [#allocation5], 1
    %1587 = vsyncpa [#allocation16], 1

</llo_original>
